<compile_context>
chip_gen: v5e
topology: v5e:2x2
jax: 0.10.0
libtpu: 0.0.40
codegen_flags: <defaults>
</compile_context>

<pallas_src>
import functools

import jax
import jax.numpy as jnp
from jax.experimental import pallas as pl
from jax.experimental.pallas import tpu as pltpu

EPS = 1e-5  # PyTorch BatchNorm2d default eps


def _safe_vmem_limit():
    # Generation-aware VMEM budget (v7x only has 64 MiB per TensorCore).
    try:
        cap = pltpu.get_tpu_info().vmem_capacity_bytes
    except Exception:
        cap = 64 * 1024 * 1024
    return min(int(cap * 3 // 4), 96 * 1024 * 1024)


_VMEM_LIMIT = _safe_vmem_limit()


def _round_up(x, m):
    return ((x + m - 1) // m) * m


def _pad_rows(m):
    # rows padded to a sublane multiple; big M padded to a multiple of the
    # 512-row tile so the m grid axis can be sharded across TensorCores.
    return _round_up(m, 8) if m <= 512 else _round_up(m, 512)


def _pick_tk(kpad):
    for cand in (512, 384, 256, 128):
        if kpad % cand == 0:
            return cand
    return 128


def _pick_tn(cpad):
    # 256-wide lane tiles when possible (v6e/v7x 2x256^2 MXU); 128 otherwise.
    return 256 if cpad % 256 == 0 else 128


# ---------------------------------------------------------------------------
# Pallas kernels
# ---------------------------------------------------------------------------
def _mm_bn_stats_kernel(a_ref, w_ref, z_ref, st_ref, acc_ref):
    """K-accumulated matmul; epilogue emits bf16 tile + per-tile BN partials."""
    @pl.when(pl.program_id(2) == 0)
    def _():
        acc_ref[...] = jnp.zeros_like(acc_ref)

    acc_ref[...] += jnp.dot(a_ref[...], w_ref[...],
                            preferred_element_type=jnp.float32)

    @pl.when(pl.program_id(2) == pl.num_programs(2) - 1)
    def _():
        acc = acc_ref[...]
        z_ref[...] = acc.astype(z_ref.dtype)
        # one-pass stats (sum, sum-of-squares) -> BN combine happens outside.
        sums = jnp.sum(acc, axis=0, keepdims=True)          # (1, tn)
        sqs = jnp.sum(acc * acc, axis=0, keepdims=True)     # (1, tn)
        st_ref[...] = jnp.concatenate([sums, sqs], axis=0)[None]


def _mm_bias_act_kernel(a_ref, w_ref, b_ref, o_ref, acc_ref, *, act):
    """K-accumulated matmul with fused bias + activation epilogue (no BN)."""
    @pl.when(pl.program_id(2) == 0)
    def _():
        acc_ref[...] = jnp.zeros_like(acc_ref)

    acc_ref[...] += jnp.dot(a_ref[...], w_ref[...],
                            preferred_element_type=jnp.float32)

    @pl.when(pl.program_id(2) == pl.num_programs(2) - 1)
    def _():
        z = acc_ref[...] + b_ref[...]
        if act == "relu":
            z = jnp.maximum(z, 0.0)
        elif act == "sigmoid":
            z = jax.nn.sigmoid(z)
        o_ref[...] = z.astype(o_ref.dtype)


def _affine_act_kernel(z_ref, s_ref, t_ref, o_ref, *, act):
    """Lane-dense BN-apply: out = act(z * scale + shift), bf16 in / bf16 out."""
    z = z_ref[...].astype(jnp.float32) * s_ref[...] + t_ref[...]
    if act == "relu":
        z = jnp.maximum(z, 0.0)
    elif act == "sigmoid":
        z = jax.nn.sigmoid(z)
    o_ref[...] = z.astype(o_ref.dtype)


# ---------------------------------------------------------------------------
# Pallas wrappers
# ---------------------------------------------------------------------------
@jax.jit
def matmul_bn_stats(a, w):
    """a: (Mpad, Kpad) bf16, w: (Kpad, Cpad) bf16 ->
       z: (Mpad, Cpad) bf16, stats: (gm, 2, Cpad) f32 (per-m-tile sum/sumsq)."""
    Mpad, Kpad = a.shape
    _, Cpad = w.shape
    tn = _pick_tn(Cpad)
    tk = _pick_tk(Kpad)
    tm = Mpad if Mpad <= 512 else 512
    gm, gn, gk = Mpad // tm, Cpad // tn, Kpad // tk
    cost = pl.CostEstimate(
        flops=2 * Mpad * Kpad * Cpad,
        transcendentals=0,
        bytes_accessed=a.size * 2 + w.size * 2 + Mpad * Cpad * 2
        + gm * 2 * Cpad * 4)
    return pl.pallas_call(
        _mm_bn_stats_kernel,
        out_shape=(jax.ShapeDtypeStruct((Mpad, Cpad), jnp.bfloat16),
                   jax.ShapeDtypeStruct((gm, 2, Cpad), jnp.float32)),
        grid=(gm, gn, gk),
        in_specs=[
            pl.BlockSpec((tm, tk), lambda m, n, k: (m, k)),
            pl.BlockSpec((tk, tn), lambda m, n, k: (k, n)),
        ],
        out_specs=(
            pl.BlockSpec((tm, tn), lambda m, n, k: (m, n)),
            pl.BlockSpec((1, 2, tn), lambda m, n, k: (m, 0, n)),
        ),
        scratch_shapes=[pltpu.VMEM((tm, tn), jnp.float32)],
        compiler_params=pltpu.CompilerParams(
            dimension_semantics=("parallel", "parallel", "arbitrary"),
            vmem_limit_bytes=_VMEM_LIMIT),
        cost_estimate=cost,
    )(a, w)


@functools.partial(jax.jit, static_argnames=("act",))
def matmul_bias_act(a, w, bias, *, act):
    """a: (Mpad, Kpad) bf16, w: (Kpad, Cpad) bf16, bias: (1, Cpad) f32."""
    Mpad, Kpad = a.shape
    _, Cpad = w.shape
    tn = _pick_tn(Cpad)
    tk = _pick_tk(Kpad)
    tm = Mpad if Mpad <= 512 else 512
    gm, gn, gk = Mpad // tm, Cpad // tn, Kpad // tk
    kernel = functools.partial(_mm_bias_act_kernel, act=act)
    cost = pl.CostEstimate(
        flops=2 * Mpad * Kpad * Cpad,
        transcendentals=(Mpad * Cpad) if act == "sigmoid" else 0,
        bytes_accessed=a.size * 2 + w.size * 2 + Cpad * 4 + Mpad * Cpad * 2)
    return pl.pallas_call(
        kernel,
        out_shape=jax.ShapeDtypeStruct((Mpad, Cpad), jnp.bfloat16),
        grid=(gm, gn, gk),
        in_specs=[
            pl.BlockSpec((tm, tk), lambda m, n, k: (m, k)),
            pl.BlockSpec((tk, tn), lambda m, n, k: (k, n)),
            pl.BlockSpec((1, tn), lambda m, n, k: (0, n)),
        ],
        out_specs=pl.BlockSpec((tm, tn), lambda m, n, k: (m, n)),
        scratch_shapes=[pltpu.VMEM((tm, tn), jnp.float32)],
        compiler_params=pltpu.CompilerParams(
            dimension_semantics=("parallel", "parallel", "arbitrary"),
            vmem_limit_bytes=_VMEM_LIMIT),
        cost_estimate=cost,
    )(a, w, bias)


@functools.partial(jax.jit, static_argnames=("act",))
def affine_act(z, scale, shift, *, act):
    """z: (Mpad, Cpad) bf16, scale/shift: (1, Cpad) f32 -> bf16."""
    Mpad, Cpad = z.shape
    tn = _pick_tn(Cpad)
    tm = Mpad if Mpad <= 512 else 512
    kernel = functools.partial(_affine_act_kernel, act=act)
    return pl.pallas_call(
        kernel,
        out_shape=jax.ShapeDtypeStruct((Mpad, Cpad), jnp.bfloat16),
        grid=(Mpad // tm, Cpad // tn),
        in_specs=[
            pl.BlockSpec((tm, tn), lambda m, n: (m, n)),
            pl.BlockSpec((1, tn), lambda m, n: (0, n)),
            pl.BlockSpec((1, tn), lambda m, n: (0, n)),
        ],
        out_specs=pl.BlockSpec((tm, tn), lambda m, n: (m, n)),
        compiler_params=pltpu.CompilerParams(
            dimension_semantics=("parallel", "parallel"),
            vmem_limit_bytes=_VMEM_LIMIT),
    )(z, scale, shift)


def _pallas_conv_out(A, Wm, *, bn_p, bias, act):
    """Pad to tile-friendly shapes, run the Pallas matmul, combine BN stats."""
    M, K = A.shape
    Cout = Wm.shape[1]
    Cpad = _round_up(Cout, 128)
    Kpad = _round_up(K, 128)
    Mpad = _pad_rows(M)
    A = A.astype(jnp.bfloat16)
    if (Mpad, Kpad) != (M, K):
        A = jnp.pad(A, ((0, Mpad - M), (0, Kpad - K)))
    Wm = Wm.astype(jnp.bfloat16)
    if (Kpad, Cpad) != (K, Cout):
        Wm = jnp.pad(Wm, ((0, Kpad - K), (0, Cpad - Cout)))
    if bn_p is not None:
        # conv bias (if any) is cancelled by BN's batch-mean subtraction.
        z, st = matmul_bn_stats(A, Wm)
        tot = jnp.sum(st, axis=0)                     # (2, Cpad)
        mean = tot[0] / M                             # divide by *true* M:
        var = jnp.maximum(tot[1] / M - mean * mean, 0.0)  # zero pad rows drop out
        gamma = jnp.pad(bn_p["g"], (0, Cpad - Cout), constant_values=1.0)
        beta = jnp.pad(bn_p["b"], (0, Cpad - Cout))
        inv = gamma * jax.lax.rsqrt(var + EPS)
        out = affine_act(z, inv.reshape(1, Cpad),
                         (beta - mean * inv).reshape(1, Cpad), act=act)
    else:
        b = bias if bias is not None else jnp.zeros((Cout,), jnp.float32)
        b = jnp.pad(b.astype(jnp.float32), (0, Cpad - Cout)).reshape(1, Cpad)
        out = matmul_bias_act(A, Wm, b, act=act)
    return out[:M, :Cout]


# Pure-JAX fallback for tiny matmuls (CBAM fc on 1x1 spatial, 1-channel convs,
# deep-encoder layers with <16 rows): pallas_call overhead dominates there.
def _fused_ref(A, Wm, bias, gamma, beta, use_bn, act):
    z = jnp.dot(A, Wm, preferred_element_type=jnp.float32)
    z = z.astype(jnp.float32)
    if bias is not None:
        z = z + bias
    if use_bn:
        mu = jnp.mean(z, axis=0, keepdims=True)
        var = jnp.mean(jnp.square(z - mu), axis=0, keepdims=True)
        z = (z - mu) * (gamma * jax.lax.rsqrt(var + EPS)) + beta
    if act == "relu":
        z = jnp.maximum(z, 0.0)
    elif act == "sigmoid":
        z = jax.nn.sigmoid(z)
    return z.astype(jnp.bfloat16)


# ---------------------------------------------------------------------------
# conv2d = NHWC im2col (JAX glue) + fused Pallas matmul kernel(s)
# ---------------------------------------------------------------------------
def conv2d(x, conv_p, *, stride=1, padding=0, bn_p=None, act="none"):
    """x: (N, H, W, Cin) bf16 NHWC.  Returns (N, Ho, Wo, Cout) bf16 NHWC."""
    w = conv_p["w"]                                   # (Cout, Cin, kh, kw) f32
    N, H, W_, Cin = x.shape
    Cout, _, kh, kw = w.shape
    if padding:
        x = jnp.pad(x, ((0, 0), (padding, padding), (padding, padding), (0, 0)))
    Hp, Wp = H + 2 * padding, W_ + 2 * padding
    Ho = (Hp - kh) // stride + 1
    Wo = (Wp - kw) // stride + 1
    if kh == 1 and kw == 1 and stride == 1:
        A = x.reshape(N * Ho * Wo, Cin)
        Wm = w.reshape(Cout, Cin).T
    else:
        # TODO(synk): fold the im2col gather (and the nearest-neighbor 2x
        # upsample of the decoder) into the matmul kernel via manual windowed
        # DMA (memory_space=pl.ANY) instead of materializing the kh*kw-
        # replicated patch matrix; for now it is built in bf16 which halves
        # that HBM traffic versus the previous f32 version.
        cols = []
        for i in range(kh):
            for j in range(kw):
                cols.append(x[:, i:i + stride * (Ho - 1) + 1:stride,
                              j:j + stride * (Wo - 1) + 1:stride, :])
        patches = jnp.stack(cols, axis=3)             # (N, Ho, Wo, kh*kw, Cin)
        A = patches.reshape(N * Ho * Wo, kh * kw * Cin)
        Wm = w.transpose(2, 3, 1, 0).reshape(kh * kw * Cin, Cout)
    M = N * Ho * Wo
    b = conv_p.get("b")
    use_bn = bn_p is not None

    if M >= 16 and Cout >= 16:
        out = _pallas_conv_out(A, Wm, bn_p=bn_p, bias=b, act=act)
    else:
        bias = None if b is None else b.reshape(1, Cout)
        gamma = bn_p["g"].reshape(1, Cout) if use_bn else None
        beta = bn_p["b"].reshape(1, Cout) if use_bn else None
        out = _fused_ref(A, Wm, bias, gamma, beta, use_bn, act)
    return out.reshape(N, Ho, Wo, Cout).astype(jnp.bfloat16)


# ---------------------------------------------------------------------------
# deterministic parameter init
# ---------------------------------------------------------------------------
# TODO(synk): no pretrained torchvision resnet34 checkpoint is loaded;
# deterministic random init is used instead (matches pretrained=False intent).
_KEY = jax.random.PRNGKey(42)
_CNT = [0]


def _init(shape, scale=0.1):
    _CNT[0] += 1
    k = jax.random.fold_in(_KEY, _CNT[0])
    return scale * jax.random.normal(k, shape, jnp.float32)


def make_conv(cin, cout, k, bias):
    p = {"w": _init((cout, cin, k, k))}
    if bias:
        p["b"] = _init((cout,), 0.01)
    return p


def make_bn(c):
    return {"g": jnp.ones((c,), jnp.float32), "b": jnp.zeros((c,), jnp.float32)}


# ---------------------------------------------------------------------------
# ResNet34 encoder (BasicBlocks) — strides are static (not in the pytree)
# ---------------------------------------------------------------------------
def make_basic_block(cin, cout, stride):
    p = {"conv1": make_conv(cin, cout, 3, False), "bn1": make_bn(cout),
         "conv2": make_conv(cout, cout, 3, False), "bn2": make_bn(cout)}
    if stride != 1 or cin != cout:
        p["ds_conv"] = make_conv(cin, cout, 1, False)
        p["ds_bn"] = make_bn(cout)
    return p


def make_res_layer(cin, cout, n, stride):
    blocks = [make_basic_block(cin, cout, stride)]
    for _ in range(n - 1):
        blocks.append(make_basic_block(cout, cout, 1))
    return blocks


def basic_block_fwd(p, x, stride):
    out = conv2d(x, p["conv1"], stride=stride, padding=1,
                 bn_p=p["bn1"], act="relu")
    out = conv2d(out, p["conv2"], stride=1, padding=1,
                 bn_p=p["bn2"], act="none")
    if "ds_conv" in p:
        idn = conv2d(x, p["ds_conv"], stride=stride, padding=0,
                     bn_p=p["ds_bn"], act="none")
    else:
        idn = x
    return jnp.maximum(out + idn, 0.0)


def res_layer_fwd(blocks, x, stride):
    x = basic_block_fwd(blocks[0], x, stride)   # stride on first block only
    for b in blocks[1:]:
        x = basic_block_fwd(b, x, 1)
    return x


# ---------------------------------------------------------------------------
# decoder building blocks (all bf16 NHWC)
# ---------------------------------------------------------------------------
def make_c2r(cin, cout):
    # Conv2dReLU with use_batchnorm=True -> conv(bias=False) + BN + ReLU
    return {"conv": make_conv(cin, cout, 3, False), "bn": make_bn(cout)}


def c2r_fwd(p, x):
    return conv2d(x, p["conv"], stride=1, padding=1, bn_p=p["bn"], act="relu")


def make_upconv(cin, cout):
    return {"c2r": make_c2r(cin, cout)}


def upconv_fwd(p, x):
    # F.interpolate(scale_factor=2, mode='nearest') on bf16 data.
    x = jnp.repeat(jnp.repeat(x, 2, axis=1), 2, axis=2)
    return c2r_fwd(p["c2r"], x)


def make_att(F):
    return {"wg_conv": make_conv(F, F, 1, True), "wg_bn": make_bn(F),
            "wx_conv": make_conv(F, F, 1, True), "wx_bn": make_bn(F),
            "psi_conv": make_conv(F, 1, 1, True), "psi_bn": make_bn(1)}


def att_fwd(p, g, x):
    g1 = conv2d(g, p["wg_conv"], bn_p=p["wg_bn"], act="none")
    x1 = conv2d(x, p["wx_conv"], bn_p=p["wx_bn"], act="none")
    psi = jnp.maximum(g1 + x1, 0.0)
    psi = conv2d(psi, p["psi_conv"], bn_p=p["psi_bn"], act="sigmoid")
    return x * psi


def make_cbam(c, reduction=16, ak=3):
    return {"fc1": make_conv(c, c // reduction, 1, True),
            "fc2": make_conv(c // reduction, c, 1, True),
            "sp": make_conv(2, 1, ak, True)}


def cbam_fwd(p, x):
    inp = x
    xf = x.astype(jnp.float32)
    avg = jnp.mean(xf, axis=(1, 2), keepdims=True).astype(jnp.bfloat16)
    mx = jnp.max(x, axis=(1, 2), keepdims=True)
    avg = conv2d(avg, p["fc1"], act="relu")
    mx = conv2d(mx, p["fc1"], act="relu")
    avg = conv2d(avg, p["fc2"], act="none")
    mx = conv2d(mx, p["fc2"], act="none")
    ch = jax.nn.sigmoid((avg + mx).astype(jnp.float32)).astype(jnp.bfloat16)
    x = inp * ch
    inp = x
    avg_s = jnp.mean(x.astype(jnp.float32), axis=3,
                     keepdims=True).astype(jnp.bfloat16)
    mx_s = jnp.max(x, axis=3, keepdims=True)
    sp = jnp.concatenate([avg_s, mx_s], axis=3)           # (N,H,W,2)
    sp = conv2d(sp, p["sp"], stride=1, padding=1, act="sigmoid")
    return inp * sp


def make_convblock(cin, cout):
    return {"cbam": make_cbam(cin),
            "c1": make_c2r(cin, cout),
            "c2": make_c2r(cout, cout)}


def convblock_fwd(p, x):
    x = cbam_fwd(p["cbam"], x)
    x = c2r_fwd(p["c1"], x)
    return c2r_fwd(p["c2"], x)


def maxpool2(x):
    N, H, W_, C = x.shape
    return x.reshape(N, H // 2, 2, W_ // 2, 2, C).max(axis=(2, 4))


# ---------------------------------------------------------------------------
# full UNet
# ---------------------------------------------------------------------------
def make_unet_params(num_classes=1):
    P = {}
    # encoder (resnet34, conv1 widened to 4 input channels)
    P["conv1"] = make_conv(4, 64, 7, False)
    P["bn1"] = make_bn(64)
    P["layer1"] = make_res_layer(64, 64, 3, 1)
    P["layer2"] = make_res_layer(64, 128, 4, 2)
    P["layer3"] = make_res_layer(128, 256, 6, 2)
    P["layer4"] = make_res_layer(256, 512, 3, 2)
    enc = (512, 256, 128, 64, 64)
    P["up1"] = make_upconv(enc[0], enc[1])
    P["up2"] = make_upconv(enc[1], enc[2])
    P["up3"] = make_upconv(enc[2], enc[3])
    P["up4"] = make_upconv(enc[3], enc[4])
    P["up5"] = make_upconv(enc[4], enc[4] // 2)
    P["att1"] = make_att(enc[1])
    P["att2"] = make_att(enc[2])
    P["att3"] = make_att(enc[3])
    P["att4"] = make_att(enc[4])
    P["dlayer1"] = make_convblock(enc[1] * 2, enc[1])
    P["dlayer2"] = make_convblock(enc[2] * 2, enc[2])
    P["dlayer3"] = make_convblock(enc[3] * 2, enc[3])
    P["dlayer4"] = make_convblock(enc[4] * 2, enc[4])
    P["final"] = make_conv(enc[4] // 2, num_classes, 1, True)
    return P


def unet_forward(P, x_nchw):
    x = jnp.transpose(x_nchw, (0, 2, 3, 1)).astype(jnp.bfloat16)  # NHWC bf16
    conv0 = conv2d(x, P["conv1"], stride=2, padding=3,
                   bn_p=P["bn1"], act="relu")
    c1 = maxpool2(conv0)
    c1 = res_layer_fwd(P["layer1"], c1, 1)
    c2 = res_layer_fwd(P["layer2"], c1, 2)
    c3 = res_layer_fwd(P["layer3"], c2, 2)
    c4 = res_layer_fwd(P["layer4"], c3, 2)

    c4 = upconv_fwd(P["up1"], c4)
    c3 = att_fwd(P["att1"], c4, c3)
    y = convblock_fwd(P["dlayer1"], jnp.concatenate([c4, c3], axis=3))

    y = upconv_fwd(P["up2"], y)
    c2 = att_fwd(P["att2"], y, c2)
    y = convblock_fwd(P["dlayer2"], jnp.concatenate([y, c2], axis=3))

    y = upconv_fwd(P["up3"], y)
    c1 = att_fwd(P["att3"], y, c1)
    y = convblock_fwd(P["dlayer3"], jnp.concatenate([y, c1], axis=3))

    y = upconv_fwd(P["up4"], y)
    conv0 = att_fwd(P["att4"], y, conv0)
    y = convblock_fwd(P["dlayer4"], jnp.concatenate([y, conv0], axis=3))

    y = upconv_fwd(P["up5"], y)
    y = conv2d(y, P["final"], stride=1, padding=0, bn_p=None, act="none")
    return jnp.transpose(y, (0, 3, 1, 2)).astype(jnp.float32)     # NCHW f32


# ---------------------------------------------------------------------------
# small self-test of the tiled matmul kernels (multi m/n/k tiles + BN combine)
# ---------------------------------------------------------------------------
def _selftest():
    k1, k2 = jax.random.split(jax.random.PRNGKey(7))
    M, K, C = 600, 900, 300            # -> gm=2, gk=2, gn=3 (all multi-tile)
    A = jax.random.normal(k1, (M, K), jnp.float32)
    W = 0.05 * jax.random.normal(k2, (K, C), jnp.float32)
    zf = jnp.dot(A.astype(jnp.bfloat16).astype(jnp.float32),
                 W.astype(jnp.bfloat16).astype(jnp.float32))
    # BN path
    bn = {"g": jnp.full((C,), 1.3, jnp.float32),
          "b": jnp.full((C,), 0.2, jnp.float32)}
    out = _pallas_conv_out(A, W, bn_p=bn, bias=None, act="relu")
    mu = jnp.mean(zf, 0, keepdims=True)
    var = jnp.mean((zf - mu) ** 2, 0, keepdims=True)
    ref = jnp.maximum((zf - mu) * (1.3 * jax.lax.rsqrt(var + EPS)) + 0.2, 0.0)
    err = float(jnp.max(jnp.abs(out.astype(jnp.float32) - ref)))
    assert err < 0.25, f"fused matmul+BN self-test max err {err}"
    # bias + sigmoid path
    bias = jnp.full((C,), 0.1, jnp.float32)
    out2 = _pallas_conv_out(A, W, bn_p=None, bias=bias, act="sigmoid")
    ref2 = jax.nn.sigmoid(zf + 0.1)
    err2 = float(jnp.max(jnp.abs(out2.astype(jnp.float32) - ref2)))
    assert err2 < 0.1, f"fused matmul+bias self-test max err {err2}"


if __name__ == "__main__":
    _selftest()
    params = make_unet_params(num_classes=1)
    # smallest input for which all encoder/decoder skip resolutions line up
    x = jax.random.normal(jax.random.PRNGKey(0), (2, 4, 32, 32), jnp.float32)
    fwd = jax.jit(unet_forward)
    out = jax.block_until_ready(fwd(params, x))
    assert out.shape == (2, 1, 32, 32), out.shape
    assert bool(jnp.all(jnp.isfinite(out)))
    print("KERNEL_OK")
</pallas_src>

<mosaic_0001>
module attributes {stable_mosaic.version = 11 : i64} {
  func.func @_mm_bn_stats_kernel(%arg0: i32, %arg1: i32, %arg2: i32, %arg3: memref<512x512xbf16, #tpu.memory_space<vmem>>, %arg4: memref<512x128xbf16, #tpu.memory_space<vmem>>, %arg5: memref<512x128xbf16, #tpu.memory_space<vmem>>, %arg6: memref<1x2x128xf32, #tpu.memory_space<vmem>>, %arg7: memref<512x128xf32, #tpu.memory_space<vmem>>) attributes {dimension_semantics = [#tpu.dimension_semantics<parallel>, #tpu.dimension_semantics<parallel>, #tpu.dimension_semantics<arbitrary>], iteration_bounds = array<i64: 2, 3, 2>, scalar_prefetch = 0 : i64, scratch_operands = 1 : i64, tpu.core_type = #tpu.core_type<tc>, window_params = [{transform_indices = @transform_0, window_bounds = array<i64: 512, 512>}, {transform_indices = @transform_1, window_bounds = array<i64: 512, 128>}, {transform_indices = @transform_2, window_bounds = array<i64: 512, 128>}, {transform_indices = @transform_3, window_bounds = array<i64: 1, 2, 128>}]} {
    %c0_i32 = arith.constant 0 : i32
    %0 = arith.cmpi eq, %arg2, %c0_i32 : i32
    %1 = arith.extui %0 : i1 to i32
    %c0_i32_0 = arith.constant 0 : i32
    %2 = arith.cmpi ne, %1, %c0_i32_0 : i32
    scf.if %2 {
      %cst_9 = arith.constant 0.000000e+00 : f32
      %12 = vector.broadcast %cst_9 : f32 to vector<512x128xf32>
      %c0_10 = arith.constant 0 : index
      %c0_11 = arith.constant 0 : index
      %13 = vector.load %arg7[%c0_10, %c0_11] : memref<512x128xf32, #tpu.memory_space<vmem>>, vector<512x128xf32>
      tpu.vector_store %arg7[%c0_10, %c0_11], %12 {strides = array<i32>} : memref<512x128xf32, #tpu.memory_space<vmem>>, vector<512x128xf32>,
    } else {
    }
    %c0 = arith.constant 0 : index
    %c0_1 = arith.constant 0 : index
    %3 = vector.load %arg7[%c0, %c0_1] : memref<512x128xf32, #tpu.memory_space<vmem>>, vector<512x128xf32>
    %c0_2 = arith.constant 0 : index
    %c0_3 = arith.constant 0 : index
    %4 = vector.load %arg3[%c0_2, %c0_3] : memref<512x512xbf16, #tpu.memory_space<vmem>>, vector<512x512xbf16>
    %c0_4 = arith.constant 0 : index
    %c0_5 = arith.constant 0 : index
    %5 = vector.load %arg4[%c0_4, %c0_5] : memref<512x128xbf16, #tpu.memory_space<vmem>>, vector<512x128xbf16>
    %cst = arith.constant dense<0.000000e+00> : vector<512x128xf32>
    %6 = tpu.matmul %4, %5, %cst {dimension_numbers = #tpu.dot_dimension_numbers<[1], [0], [0], [1], [0, 0, 1, 1], [], []>} : vector<512x512xbf16>, vector<512x128xbf16>, vector<512x128xf32> -> vector<512x128xf32>
    %7 = arith.addf %3, %6 : vector<512x128xf32>
    %c0_6 = arith.constant 0 : index
    %c0_7 = arith.constant 0 : index
    %8 = vector.load %arg7[%c0_6, %c0_7] : memref<512x128xf32, #tpu.memory_space<vmem>>, vector<512x128xf32>
    tpu.vector_store %arg7[%c0_6, %c0_7], %7 {strides = array<i32>} : memref<512x128xf32, #tpu.memory_space<vmem>>, vector<512x128xf32>,
    %c1_i32 = arith.constant 1 : i32
    %9 = arith.cmpi eq, %arg2, %c1_i32 : i32
    %10 = arith.extui %9 : i1 to i32
    %c0_i32_8 = arith.constant 0 : i32
    %11 = arith.cmpi ne, %10, %c0_i32_8 : i32
    scf.if %11 {
      %c0_9 = arith.constant 0 : index
      %c0_10 = arith.constant 0 : index
      %12 = vector.load %arg7[%c0_9, %c0_10] : memref<512x128xf32, #tpu.memory_space<vmem>>, vector<512x128xf32>
      %13 = arith.truncf %12 : vector<512x128xf32> to vector<512x128xbf16>
      %c0_11 = arith.constant 0 : index
      %c0_12 = arith.constant 0 : index
      %14 = vector.load %arg5[%c0_11, %c0_12] : memref<512x128xbf16, #tpu.memory_space<vmem>>, vector<512x128xbf16>
      tpu.vector_store %arg5[%c0_11, %c0_12], %13 {strides = array<i32>} : memref<512x128xbf16, #tpu.memory_space<vmem>>, vector<512x128xbf16>,
      %cst_13 = arith.constant dense<0.000000e+00> : vector<128xf32>
      %15 = vector.multi_reduction <add>, %12, %cst_13 [0] : vector<512x128xf32> to vector<128xf32>
      %16 = vector.shape_cast %15 : vector<128xf32> to vector<1x128xf32>
      %17 = arith.mulf %12, %12 : vector<512x128xf32>
      %cst_14 = arith.constant dense<0.000000e+00> : vector<128xf32>
      %18 = vector.multi_reduction <add>, %17, %cst_14 [0] : vector<512x128xf32> to vector<128xf32>
      %19 = vector.shape_cast %18 : vector<128xf32> to vector<1x128xf32>
      %20 = tpu.concatenate %16, %19 in 0 : vector<1x128xf32>, vector<1x128xf32> -> vector<2x128xf32>
      %21 = vector.shape_cast %20 : vector<2x128xf32> to vector<1x2x128xf32>
      %c0_15 = arith.constant 0 : index
      %c0_16 = arith.constant 0 : index
      %c0_17 = arith.constant 0 : index
      %22 = vector.load %arg6[%c0_15, %c0_16, %c0_17] : memref<1x2x128xf32, #tpu.memory_space<vmem>>, vector<1x2x128xf32>
      tpu.vector_store %arg6[%c0_15, %c0_16, %c0_17], %21 {strides = array<i32>} : memref<1x2x128xf32, #tpu.memory_space<vmem>>, vector<1x2x128xf32>,
    } else {
    }
    return
  }
  func.func @transform_0(%arg0: i32, %arg1: i32, %arg2: i32) -> (i32, i32) {
    %c0_i32 = arith.constant 0 : i32
    return %arg0, %arg2 : i32, i32
  }
  func.func @transform_1(%arg0: i32, %arg1: i32, %arg2: i32) -> (i32, i32) {
    %c0_i32 = arith.constant 0 : i32
    return %arg2, %arg1 : i32, i32
  }
  func.func @transform_2(%arg0: i32, %arg1: i32, %arg2: i32) -> (i32, i32) {
    %c0_i32 = arith.constant 0 : i32
    return %arg0, %arg1 : i32, i32
  }
  func.func @transform_3(%arg0: i32, %arg1: i32, %arg2: i32) -> (i32, i32, i32) {
    %c0_i32 = arith.constant 0 : i32
    %c0_i32_0 = arith.constant 0 : i32
    return %arg0, %c0_i32, %arg1 : i32, i32, i32
  }
}

</mosaic_0001>

<llo_original>
// kernel: matmul_bn_stats.1
$region0: #{matmul_bn_stats.1}
  #allocation0 [shape = 'u32[]', space=smem, size = 0x4, offset = 0x4, fixed_abs, tag = 'smem constant byte address 0x4 - core index']
  #allocation1 [shape = 'u32[72,128]{1,0:T(1,128)}', space=vmem, size = 0x9000, scoped, tag = 'internal scratch']
  #allocation2 [shape = 'f32[512,128]{1,0:T(8,128)}', space=vmem, size = 0x40000, scoped, tag = 'scratch operand']
  %s0 = inlined_call_operand.hbm [shape: bf16[1024,1024], index: 0, kind: input, shape index: {}]
  %s1 = inlined_call_operand.hbm [shape: bf16[1024,384], index: 1, kind: input, shape index: {}]
  %s2 = inlined_call_operand.hbm [shape: bf16[1024,384], index: 2, kind: output, shape index: {0}]
  %s3 = inlined_call_operand.hbm [shape: f32[2,2,384], index: 3, kind: output, shape index: {1}]
  %4 = xla_tuple %s2, %s3
  %s5 = sld [smem:[#allocation0]]
  $region65: #{matmul_bn_stats.1} parent=0
    _
  %s7 = ssub.s32 1, %s5
  %s8 = scalar_select 0, %s7, %s5
  $region1: #{matmul_bn_stats.1} parent=0
    #allocation3 [shape = 'u8[1048576]{0}', space=vmem, size = 0x100000, scoped, tag = 'input window, operand 0']
    #allocation4 [shape = 's32[2]{0}', space=sflag, size = 0x8, scoped, tag = 'scoped memory for matmul_bn_stats.1']
    #allocation5 [shape = 's32[2]{0}', space=sflag, size = 0x8, scoped, tag = 'scoped memory for matmul_bn_stats.1']
    #allocation6 [shape = 'u8[262144]{0}', space=vmem, size = 0x40000, scoped, tag = 'input window, operand 1']
    #allocation7 [shape = 's32[2]{0}', space=sflag, size = 0x8, scoped, tag = 'scoped memory for matmul_bn_stats.1']
    #allocation8 [shape = 'u8[262144]{0}', space=vmem, size = 0x40000, scoped, tag = 'output window, operand 0']
    #allocation9 [shape = 'u8[2048]{0}', space=vmem, size = 0x800, scoped, tag = 'output window, operand 1']
    #allocation10 [shape = 's32[2]{0}', space=sflag, size = 0x8, scoped, tag = 'scoped memory for matmul_bn_stats.1']
    %9 = vsyncpa [#allocation4], 0
    %s10 = scalar_lea.sflag [#allocation4], 1
    %11 = vsyncpa %s10, 0
    %12 = vsyncpa [#allocation7], 0
    %s13 = scalar_lea.sflag [#allocation7], 1
    %14 = vsyncpa %s13, 0
    %15 = vsyncpa [#allocation5], 0
    %s16 = scalar_lea.sflag [#allocation5], 1
    %17 = vsyncpa %s16, 0
    %18 = vsyncpa [#allocation10], 0
    %s19 = scalar_lea.sflag [#allocation10], 1
    %20 = vsyncpa %s19, 0
    loop: start=0, step=1, limit=14
    $region2: #{matmul_bn_stats.1} parent=1 // loop_pre_header
      _
    $region3: #{matmul_bn_stats.1} parent=1 // loop_header
      %s22 = sphi 0, %s26
      %p23 = scmp.ge.s32.totalorder %s22, 14
      %s29 = sphi 0, %s48
      %s30 = sphi 0, %s44
      %s31 = sphi 0, %s40
      %s32 = sphi 0, %s29
      %s33 = sphi 0, %s30
      %s34 = sphi 0, %s31
      %s35 = sphi 0, %s32
      %s36 = sphi 0, %s33
      %s37 = sphi 0, %s34
      %s53 = sphi 0, %s55
      %s56 = sphi 0, %s53
      %s57 = sphi 0, %s56
      %s73 = sphi 0, %s57
      %s81 = sphi 0, %s83
      %s84 = sphi 0, %s81
      %s85 = sphi 0, %s84
      %s101 = sphi 0, %s85
      %s109 = sphi 0, %s111
      %s112 = sphi 0, %s109
      %s113 = sphi 0, %s112
      %s129 = sphi 0, %s113
      %s137 = sphi 0, %s139
      %s140 = sphi 0, %s137
      %s141 = sphi 0, %s140
      %s157 = sphi 0, %s141
    $region4: #{matmul_bn_stats.1} parent=1 // loop_header_branch
      %25 = sbr.rel (%p23) target = $region8
    $region5: #{matmul_bn_stats.1} parent=1 // loop_body
      %s27 = ssub.s32 %s22, 1
      %s28 = ssub.s32 %s22, 2
      %s38 = sadd.s32 1, %s31
      %p39 = scmp.ge.s32.totalorder %s38, 2
      %s40 = scalar_select %p39, 0, %s38
      %s41 = sadd.s32 1, %s30
      %s42 = scalar_select %p39, %s41, %s30
      %p43 = scmp.ge.s32.totalorder %s42, 3
      %s44 = scalar_select %p43, 0, %s42
      %s45 = sadd.s32 1, %s29
      %s46 = scalar_select %p43, %s45, %s29
      %p47 = scmp.ge.s32.totalorder %s46, 2
      %s48 = scalar_select %p47, 0, %s46
      %s49 = ssub.s32 %s29, %s48
      %s50 = ssub.s32 %s31, %s40
      %s51 = sor.u32 %s49, %s50
      %p52 = scmp.eq.s32.totalorder %s51, 0
      %s54 = sadd.s32 %s53, 1
      %s55 = scalar_select %p52, %s53, %s54
      %p58 = pneg %p52
      %p59 = scmp.eq.s32.totalorder %s22, 11
      %p60 = por %p58, %p59
      %p61 = scmp.ne.s32.totalorder %s53, %s56
      %p62 = scmp.eq.s32.totalorder %s22, 0
      %p63 = por %p61, %p62
      %p64 = scmp.ne.s32.totalorder %s53, %s56
      %p65 = scmp.eq.s32.totalorder %s27, 11
      %p66 = por %p64, %p65
      %p67 = scmp.ne.s32.totalorder %s56, %s57
      %p68 = scmp.eq.s32.totalorder %s27, 0
      %p69 = por %p67, %p68
      %p70 = scmp.ne.s32.totalorder %s56, %s57
      %p71 = scmp.eq.s32.totalorder %s28, 11
      %p72 = por %p70, %p71
      %p74 = scmp.ne.s32.totalorder %s57, %s73
      %p75 = scmp.eq.s32.totalorder %s28, 0
      %p76 = por %p74, %p75
      %s77 = ssub.s32 %s31, %s40
      %s78 = ssub.s32 %s30, %s44
      %s79 = sor.u32 %s77, %s78
      %p80 = scmp.eq.s32.totalorder %s79, 0
      %s82 = sadd.s32 %s81, 1
      %s83 = scalar_select %p80, %s81, %s82
      %p86 = pneg %p80
      %p87 = scmp.eq.s32.totalorder %s22, 11
      %p88 = por %p86, %p87
      %p89 = scmp.ne.s32.totalorder %s81, %s84
      %p90 = scmp.eq.s32.totalorder %s22, 0
      %p91 = por %p89, %p90
      %p92 = scmp.ne.s32.totalorder %s81, %s84
      %p93 = scmp.eq.s32.totalorder %s27, 11
      %p94 = por %p92, %p93
      %p95 = scmp.ne.s32.totalorder %s84, %s85
      %p96 = scmp.eq.s32.totalorder %s27, 0
      %p97 = por %p95, %p96
      %p98 = scmp.ne.s32.totalorder %s84, %s85
      %p99 = scmp.eq.s32.totalorder %s28, 11
      %p100 = por %p98, %p99
      %p102 = scmp.ne.s32.totalorder %s85, %s101
      %p103 = scmp.eq.s32.totalorder %s28, 0
      %p104 = por %p102, %p103
      %s105 = ssub.s32 %s29, %s48
      %s106 = ssub.s32 %s30, %s44
      %s107 = sor.u32 %s105, %s106
      %p108 = scmp.eq.s32.totalorder %s107, 0
      %s110 = sadd.s32 %s109, 1
      %s111 = scalar_select %p108, %s109, %s110
      %p114 = pneg %p108
      %p115 = scmp.eq.s32.totalorder %s22, 11
      %p116 = por %p114, %p115
      %p117 = scmp.ne.s32.totalorder %s109, %s112
      %p118 = scmp.eq.s32.totalorder %s22, 0
      %p119 = por %p117, %p118
      %p120 = scmp.ne.s32.totalorder %s109, %s112
      %p121 = scmp.eq.s32.totalorder %s27, 11
      %p122 = por %p120, %p121
      %p123 = scmp.ne.s32.totalorder %s112, %s113
      %p124 = scmp.eq.s32.totalorder %s27, 0
      %p125 = por %p123, %p124
      %p126 = scmp.ne.s32.totalorder %s112, %s113
      %p127 = scmp.eq.s32.totalorder %s28, 11
      %p128 = por %p126, %p127
      %p130 = scmp.ne.s32.totalorder %s113, %s129
      %p131 = scmp.eq.s32.totalorder %s28, 0
      %p132 = por %p130, %p131
      %s133 = ssub.s32 %s29, %s48
      %s134 = ssub.s32 %s30, %s44
      %s135 = sor.u32 %s133, %s134
      %p136 = scmp.eq.s32.totalorder %s135, 0
      %s138 = sadd.s32 %s137, 1
      %s139 = scalar_select %p136, %s137, %s138
      %p142 = pneg %p136
      %p143 = scmp.eq.s32.totalorder %s22, 11
      %p144 = por %p142, %p143
      %p145 = scmp.ne.s32.totalorder %s137, %s140
      %p146 = scmp.eq.s32.totalorder %s22, 0
      %p147 = por %p145, %p146
      %p148 = scmp.ne.s32.totalorder %s137, %s140
      %p149 = scmp.eq.s32.totalorder %s27, 11
      %p150 = por %p148, %p149
      %p151 = scmp.ne.s32.totalorder %s140, %s141
      %p152 = scmp.eq.s32.totalorder %s27, 0
      %p153 = por %p151, %p152
      %p154 = scmp.ne.s32.totalorder %s140, %s141
      %p155 = scmp.eq.s32.totalorder %s28, 11
      %p156 = por %p154, %p155
      %p158 = scmp.ne.s32.totalorder %s141, %s157
      %p159 = scmp.eq.s32.totalorder %s28, 0
      %p160 = por %p158, %p159
      %p161 = scmp.le.s32.totalorder 1, %s22
      %p162 = scmp.lt.s32.totalorder %s22, 13
      %p163 = pnand %p161, %p162
      %p164 = pneg %p163
      // Predicated region
      $region9: #{matmul_bn_stats.1} parent=5 // pred_check
        _
      $region10: #{matmul_bn_stats.1} parent=5 // pred_check_branch
        %166 = sbr.rel (%p163) target = $region12
      $region11: #{matmul_bn_stats.1} parent=5 // pred_region
        %s167 = ssub.s32 %s22, 1
      $region12: #{matmul_bn_stats.1} parent=5 // pred_fallthru
        _
      %p168 = scmp.lt.s32.totalorder %s22, 12
      // Predicated region
      $region13: #{matmul_bn_stats.1} parent=5 // pred_check
        %p169 = pneg %p168
      $region14: #{matmul_bn_stats.1} parent=5 // pred_check_branch
        %171 = sbr.rel (%p169) target = $region16
      $region15: #{matmul_bn_stats.1} parent=5 // pred_region
        // Predicated region
        $region17: #{matmul_bn_stats.1} parent=15 // pred_check
          %p172 = pneg %p63
        $region18: #{matmul_bn_stats.1} parent=15 // pred_check_branch
          %174 = sbr.rel (%p172) target = $region20
        $region19: #{matmul_bn_stats.1} parent=15 // pred_region
          %s175 = sand.u32 %s53, 1
          %s176 = scalar_lea.sflag [#allocation4], %s175
          %s177 = sand.u32 %s53, 1
          %s178 = smul.addr %s177, 1024
          %s179 = scalar_lea.vmem [#allocation3], %s178
          %s180 = smul.u32 64, %s29
          %s181 = smul.u32 4, %s31
          %183 = vsyncadd %s176, 0
          %s184 = smul.addr %s180, 8
          %s185 = sadd.s32 %s181, %s184
          %s186 = smul.addr %s185, 4
          %s187 = scalar_lea.hbm %s0, %s186
          %s188 = sshll.u32 %s187, 4
          %s189 = int_to_ptr.hbm [resolvable:$true] %s188
          %s190 = sshll.u32 %s179, 4
          %s191 = int_to_ptr.vmem [resolvable:$true] %s190
          %196 = dma.hbm_to_vmem [thread:$0]  %s189, 16384, %s191, %s176, 512, 256, 16
        $region20: #{matmul_bn_stats.1} parent=15 // pred_fallthru
          _
        // Predicated region
        $region21: #{matmul_bn_stats.1} parent=15 // pred_check
          %p197 = pneg %p91
        $region22: #{matmul_bn_stats.1} parent=15 // pred_check_branch
          %199 = sbr.rel (%p197) target = $region24
        $region23: #{matmul_bn_stats.1} parent=15 // pred_region
          %s200 = sand.u32 %s81, 1
          %s201 = scalar_lea.sflag [#allocation7], %s200
          %s202 = sand.u32 %s81, 1
          %s203 = smul.addr %s202, 256
          %s204 = scalar_lea.vmem [#allocation6], %s203
          %s205 = smul.u32 64, %s31
          %207 = vsyncadd %s201, 0
          %s208 = smul.addr %s205, 3
          %s209 = sadd.s32 %s30, %s208
          %s210 = smul.addr %s209, 4
          %s211 = scalar_lea.hbm %s1, %s210
          %s212 = sshll.u32 %s211, 4
          %s213 = int_to_ptr.hbm [resolvable:$true] %s212
          %s214 = sshll.u32 %s204, 4
          %s215 = int_to_ptr.vmem [resolvable:$true] %s214
          %220 = dma.hbm_to_vmem [thread:$0]  %s213, 4096, %s215, %s201, 192, 64, 4
        $region24: #{matmul_bn_stats.1} parent=15 // pred_fallthru
          _
      $region16: #{matmul_bn_stats.1} parent=5 // pred_fallthru
        _
      %p221 = scmp.le.s32.totalorder 1, %s22
      %p222 = scmp.lt.s32.totalorder %s22, 13
      %p223 = pnand %p221, %p222
      %p224 = pneg %p223
      // Predicated region
      $region25: #{matmul_bn_stats.1} parent=5 // pred_check
        _
      $region26: #{matmul_bn_stats.1} parent=5 // pred_check_branch
        %226 = sbr.rel (%p223) target = $region28
      $region27: #{matmul_bn_stats.1} parent=5 // pred_region
        %s227 = ssub.s32 %s22, 1
        %s228 = sand.u32 %s56, 1
        %s229 = scalar_lea.sflag [#allocation4], %s228
        %s230 = sand.u32 %s56, 1
        %s231 = smul.addr %s230, 1024
        %s232 = scalar_lea.vmem [#allocation3], %s231
        // Predicated region
        $region29: #{matmul_bn_stats.1} parent=27 // pred_check
          %p233 = pneg %p69
        $region30: #{matmul_bn_stats.1} parent=27 // pred_check_branch
          %235 = sbr.rel (%p233) target = $region32
        $region31: #{matmul_bn_stats.1} parent=27 // pred_region
          %237 = dma.done %s229, 16384
        $region32: #{matmul_bn_stats.1} parent=27 // pred_fallthru
          _
        %s238 = sand.u32 %s84, 1
        %s239 = scalar_lea.sflag [#allocation7], %s238
        %s240 = sand.u32 %s84, 1
        %s241 = smul.addr %s240, 256
        %s242 = scalar_lea.vmem [#allocation6], %s241
        // Predicated region
        $region33: #{matmul_bn_stats.1} parent=27 // pred_check
          %p243 = pneg %p97
        $region34: #{matmul_bn_stats.1} parent=27 // pred_check_branch
          %245 = sbr.rel (%p243) target = $region36
        $region35: #{matmul_bn_stats.1} parent=27 // pred_region
          %247 = dma.done %s239, 4096
        $region36: #{matmul_bn_stats.1} parent=27 // pred_fallthru
          _
        %s248 = sand.u32 %s56, 1
        %s249 = scalar_lea.sflag [#allocation4], %s248
        %s250 = sand.u32 %s56, 1
        %s251 = smul.addr %s250, 1024
        %s252 = scalar_lea.vmem [#allocation3], %s251
        %p253 = pneg %p69
        %p254 = pneg %p66
        %s255 = sand.u32 %s84, 1
        %s256 = scalar_lea.sflag [#allocation7], %s255
        %s257 = sand.u32 %s84, 1
        %s258 = smul.addr %s257, 256
        %s259 = scalar_lea.vmem [#allocation6], %s258
        %p260 = pneg %p97
        %p261 = pneg %p94
        %p262 = pneg %p125
        %p263 = pneg %p122
        %s264 = sand.u32 %s112, 1
        %s265 = scalar_lea.sflag [#allocation5], %s264
        %s266 = sand.u32 %s112, 1
        %s267 = smul.addr %s266, 256
        %s268 = scalar_lea.vmem [#allocation8], %s267
        %p269 = pneg %p153
        %p270 = pneg %p150
        %s271 = sand.u32 %s140, 1
        %s272 = scalar_lea.sflag [#allocation10], %s271
        %s273 = sand.u32 %s140, 1
        %s274 = smul.addr %s273, 2
        %s275 = scalar_lea.vmem [#allocation9], %s274
        %s276 = smul.u32 64, %s32
        %s277 = smul.u32 4, %s34
        %s278 = smul.u32 64, %s34
        %s279 = smul.u32 64, %s32
        %p280 = scmp.eq.s32.totalorder %s34, 0
        // Predicated region
        $region37: #{matmul_bn_stats.1} parent=27 // pred_check
          %p281 = pneg %p280
        $region38: #{matmul_bn_stats.1} parent=27 // pred_check_branch
          %283 = sbr.rel (%p281) target = $region40
        $region39: #{matmul_bn_stats.1} parent=27 // pred_region
          %284 = vst [vmem:[#allocation2] sm:$0xff] 0.0
          %285 = vst [vmem:[#allocation2 + $0x8] sm:$0xff] 0.0
          %286 = vst [vmem:[#allocation2 + $0x10] sm:$0xff] 0.0
          %287 = vst [vmem:[#allocation2 + $0x18] sm:$0xff] 0.0
          %288 = vst [vmem:[#allocation2 + $0x20] sm:$0xff] 0.0
          %289 = vst [vmem:[#allocation2 + $0x28] sm:$0xff] 0.0
          %290 = vst [vmem:[#allocation2 + $0x30] sm:$0xff] 0.0
          %291 = vst [vmem:[#allocation2 + $0x38] sm:$0xff] 0.0
          %292 = vst [vmem:[#allocation2 + $0x40] sm:$0xff] 0.0
          %293 = vst [vmem:[#allocation2 + $0x48] sm:$0xff] 0.0
          %294 = vst [vmem:[#allocation2 + $0x50] sm:$0xff] 0.0
          %295 = vst [vmem:[#allocation2 + $0x58] sm:$0xff] 0.0
          %296 = vst [vmem:[#allocation2 + $0x60] sm:$0xff] 0.0
          %297 = vst [vmem:[#allocation2 + $0x68] sm:$0xff] 0.0
          %298 = vst [vmem:[#allocation2 + $0x70] sm:$0xff] 0.0
          %299 = vst [vmem:[#allocation2 + $0x78] sm:$0xff] 0.0
          %300 = vst [vmem:[#allocation2 + $0x80] sm:$0xff] 0.0
          %301 = vst [vmem:[#allocation2 + $0x88] sm:$0xff] 0.0
          %302 = vst [vmem:[#allocation2 + $0x90] sm:$0xff] 0.0
          %303 = vst [vmem:[#allocation2 + $0x98] sm:$0xff] 0.0
          %304 = vst [vmem:[#allocation2 + $0xa0] sm:$0xff] 0.0
          %305 = vst [vmem:[#allocation2 + $0xa8] sm:$0xff] 0.0
          %306 = vst [vmem:[#allocation2 + $0xb0] sm:$0xff] 0.0
          %307 = vst [vmem:[#allocation2 + $0xb8] sm:$0xff] 0.0
          %308 = vst [vmem:[#allocation2 + $0xc0] sm:$0xff] 0.0
          %309 = vst [vmem:[#allocation2 + $0xc8] sm:$0xff] 0.0
          %310 = vst [vmem:[#allocation2 + $0xd0] sm:$0xff] 0.0
          %311 = vst [vmem:[#allocation2 + $0xd8] sm:$0xff] 0.0
          %312 = vst [vmem:[#allocation2 + $0xe0] sm:$0xff] 0.0
          %313 = vst [vmem:[#allocation2 + $0xe8] sm:$0xff] 0.0
          %314 = vst [vmem:[#allocation2 + $0xf0] sm:$0xff] 0.0
          %315 = vst [vmem:[#allocation2 + $0xf8] sm:$0xff] 0.0
          %316 = vst [vmem:[#allocation2 + $0x100] sm:$0xff] 0.0
          %317 = vst [vmem:[#allocation2 + $0x108] sm:$0xff] 0.0
          %318 = vst [vmem:[#allocation2 + $0x110] sm:$0xff] 0.0
          %319 = vst [vmem:[#allocation2 + $0x118] sm:$0xff] 0.0
          %320 = vst [vmem:[#allocation2 + $0x120] sm:$0xff] 0.0
          %321 = vst [vmem:[#allocation2 + $0x128] sm:$0xff] 0.0
          %322 = vst [vmem:[#allocation2 + $0x130] sm:$0xff] 0.0
          %323 = vst [vmem:[#allocation2 + $0x138] sm:$0xff] 0.0
          %324 = vst [vmem:[#allocation2 + $0x140] sm:$0xff] 0.0
          %325 = vst [vmem:[#allocation2 + $0x148] sm:$0xff] 0.0
          %326 = vst [vmem:[#allocation2 + $0x150] sm:$0xff] 0.0
          %327 = vst [vmem:[#allocation2 + $0x158] sm:$0xff] 0.0
          %328 = vst [vmem:[#allocation2 + $0x160] sm:$0xff] 0.0
          %329 = vst [vmem:[#allocation2 + $0x168] sm:$0xff] 0.0
          %330 = vst [vmem:[#allocation2 + $0x170] sm:$0xff] 0.0
          %331 = vst [vmem:[#allocation2 + $0x178] sm:$0xff] 0.0
          %332 = vst [vmem:[#allocation2 + $0x180] sm:$0xff] 0.0
          %333 = vst [vmem:[#allocation2 + $0x188] sm:$0xff] 0.0
          %334 = vst [vmem:[#allocation2 + $0x190] sm:$0xff] 0.0
          %335 = vst [vmem:[#allocation2 + $0x198] sm:$0xff] 0.0
          %336 = vst [vmem:[#allocation2 + $0x1a0] sm:$0xff] 0.0
          %337 = vst [vmem:[#allocation2 + $0x1a8] sm:$0xff] 0.0
          %338 = vst [vmem:[#allocation2 + $0x1b0] sm:$0xff] 0.0
          %339 = vst [vmem:[#allocation2 + $0x1b8] sm:$0xff] 0.0
          %340 = vst [vmem:[#allocation2 + $0x1c0] sm:$0xff] 0.0
          %341 = vst [vmem:[#allocation2 + $0x1c8] sm:$0xff] 0.0
          %342 = vst [vmem:[#allocation2 + $0x1d0] sm:$0xff] 0.0
          %343 = vst [vmem:[#allocation2 + $0x1d8] sm:$0xff] 0.0
          %344 = vst [vmem:[#allocation2 + $0x1e0] sm:$0xff] 0.0
          %345 = vst [vmem:[#allocation2 + $0x1e8] sm:$0xff] 0.0
          %346 = vst [vmem:[#allocation2 + $0x1f0] sm:$0xff] 0.0
          %347 = vst [vmem:[#allocation2 + $0x1f8] sm:$0xff] 0.0
        $region40: #{matmul_bn_stats.1} parent=27 // pred_fallthru
          _
        %v348 = vld [vmem:[#allocation2] sm:$0xff]
        %v349 = vld [vmem:[#allocation2 + $0x8] sm:$0xff]
        %v350 = vld [vmem:[#allocation2 + $0x10] sm:$0xff]
        %v351 = vld [vmem:[#allocation2 + $0x18] sm:$0xff]
        %v352 = vld [vmem:[#allocation2 + $0x20] sm:$0xff]
        %v353 = vld [vmem:[#allocation2 + $0x28] sm:$0xff]
        %v354 = vld [vmem:[#allocation2 + $0x30] sm:$0xff]
        %v355 = vld [vmem:[#allocation2 + $0x38] sm:$0xff]
        %v356 = vld [vmem:[#allocation2 + $0x40] sm:$0xff]
        %v357 = vld [vmem:[#allocation2 + $0x48] sm:$0xff]
        %v358 = vld [vmem:[#allocation2 + $0x50] sm:$0xff]
        %v359 = vld [vmem:[#allocation2 + $0x58] sm:$0xff]
        %v360 = vld [vmem:[#allocation2 + $0x60] sm:$0xff]
        %v361 = vld [vmem:[#allocation2 + $0x68] sm:$0xff]
        %v362 = vld [vmem:[#allocation2 + $0x70] sm:$0xff]
        %v363 = vld [vmem:[#allocation2 + $0x78] sm:$0xff]
        %v364 = vld [vmem:[#allocation2 + $0x80] sm:$0xff]
        %v365 = vld [vmem:[#allocation2 + $0x88] sm:$0xff]
        %v366 = vld [vmem:[#allocation2 + $0x90] sm:$0xff]
        %v367 = vld [vmem:[#allocation2 + $0x98] sm:$0xff]
        %v368 = vld [vmem:[#allocation2 + $0xa0] sm:$0xff]
        %v369 = vld [vmem:[#allocation2 + $0xa8] sm:$0xff]
        %v370 = vld [vmem:[#allocation2 + $0xb0] sm:$0xff]
        %v371 = vld [vmem:[#allocation2 + $0xb8] sm:$0xff]
        %v372 = vld [vmem:[#allocation2 + $0xc0] sm:$0xff]
        %v373 = vld [vmem:[#allocation2 + $0xc8] sm:$0xff]
        %v374 = vld [vmem:[#allocation2 + $0xd0] sm:$0xff]
        %v375 = vld [vmem:[#allocation2 + $0xd8] sm:$0xff]
        %v376 = vld [vmem:[#allocation2 + $0xe0] sm:$0xff]
        %v377 = vld [vmem:[#allocation2 + $0xe8] sm:$0xff]
        %v378 = vld [vmem:[#allocation2 + $0xf0] sm:$0xff]
        %v379 = vld [vmem:[#allocation2 + $0xf8] sm:$0xff]
        %v380 = vld [vmem:[#allocation2 + $0x100] sm:$0xff]
        %v381 = vld [vmem:[#allocation2 + $0x108] sm:$0xff]
        %v382 = vld [vmem:[#allocation2 + $0x110] sm:$0xff]
        %v383 = vld [vmem:[#allocation2 + $0x118] sm:$0xff]
        %v384 = vld [vmem:[#allocation2 + $0x120] sm:$0xff]
        %v385 = vld [vmem:[#allocation2 + $0x128] sm:$0xff]
        %v386 = vld [vmem:[#allocation2 + $0x130] sm:$0xff]
        %v387 = vld [vmem:[#allocation2 + $0x138] sm:$0xff]
        %v388 = vld [vmem:[#allocation2 + $0x140] sm:$0xff]
        %v389 = vld [vmem:[#allocation2 + $0x148] sm:$0xff]
        %v390 = vld [vmem:[#allocation2 + $0x150] sm:$0xff]
        %v391 = vld [vmem:[#allocation2 + $0x158] sm:$0xff]
        %v392 = vld [vmem:[#allocation2 + $0x160] sm:$0xff]
        %v393 = vld [vmem:[#allocation2 + $0x168] sm:$0xff]
        %v394 = vld [vmem:[#allocation2 + $0x170] sm:$0xff]
        %v395 = vld [vmem:[#allocation2 + $0x178] sm:$0xff]
        %v396 = vld [vmem:[#allocation2 + $0x180] sm:$0xff]
        %v397 = vld [vmem:[#allocation2 + $0x188] sm:$0xff]
        %v398 = vld [vmem:[#allocation2 + $0x190] sm:$0xff]
        %v399 = vld [vmem:[#allocation2 + $0x198] sm:$0xff]
        %v400 = vld [vmem:[#allocation2 + $0x1a0] sm:$0xff]
        %v401 = vld [vmem:[#allocation2 + $0x1a8] sm:$0xff]
        %v402 = vld [vmem:[#allocation2 + $0x1b0] sm:$0xff]
        %v403 = vld [vmem:[#allocation2 + $0x1b8] sm:$0xff]
        %v404 = vld [vmem:[#allocation2 + $0x1c0] sm:$0xff]
        %v405 = vld [vmem:[#allocation2 + $0x1c8] sm:$0xff]
        %v406 = vld [vmem:[#allocation2 + $0x1d0] sm:$0xff]
        %v407 = vld [vmem:[#allocation2 + $0x1d8] sm:$0xff]
        %v408 = vld [vmem:[#allocation2 + $0x1e0] sm:$0xff]
        %v409 = vld [vmem:[#allocation2 + $0x1e8] sm:$0xff]
        %v410 = vld [vmem:[#allocation2 + $0x1f0] sm:$0xff]
        %v411 = vld [vmem:[#allocation2 + $0x1f8] sm:$0xff]
        %v412 = vld [vmem:[%s232] sm:$0xff]
        %v413 = vld [vmem:[%s232 + $0x8] sm:$0xff]
        %v414 = vld [vmem:[%s232 + $0x10] sm:$0xff]
        %v415 = vld [vmem:[%s232 + $0x18] sm:$0xff]
        %v416 = vld [vmem:[%s232 + $0x20] sm:$0xff]
        %v417 = vld [vmem:[%s232 + $0x28] sm:$0xff]
        %v418 = vld [vmem:[%s232 + $0x30] sm:$0xff]
        %v419 = vld [vmem:[%s232 + $0x38] sm:$0xff]
        %v420 = vld [vmem:[%s232 + $0x40] sm:$0xff]
        %v421 = vld [vmem:[%s232 + $0x48] sm:$0xff]
        %v422 = vld [vmem:[%s232 + $0x50] sm:$0xff]
        %v423 = vld [vmem:[%s232 + $0x58] sm:$0xff]
        %v424 = vld [vmem:[%s232 + $0x60] sm:$0xff]
        %v425 = vld [vmem:[%s232 + $0x68] sm:$0xff]
        %v426 = vld [vmem:[%s232 + $0x70] sm:$0xff]
        %v427 = vld [vmem:[%s232 + $0x78] sm:$0xff]
        %v428 = vld [vmem:[%s232 + $0x80] sm:$0xff]
        %v429 = vld [vmem:[%s232 + $0x88] sm:$0xff]
        %v430 = vld [vmem:[%s232 + $0x90] sm:$0xff]
        %v431 = vld [vmem:[%s232 + $0x98] sm:$0xff]
        %v432 = vld [vmem:[%s232 + $0xa0] sm:$0xff]
        %v433 = vld [vmem:[%s232 + $0xa8] sm:$0xff]
        %v434 = vld [vmem:[%s232 + $0xb0] sm:$0xff]
        %v435 = vld [vmem:[%s232 + $0xb8] sm:$0xff]
        %v436 = vld [vmem:[%s232 + $0xc0] sm:$0xff]
        %v437 = vld [vmem:[%s232 + $0xc8] sm:$0xff]
        %v438 = vld [vmem:[%s232 + $0xd0] sm:$0xff]
        %v439 = vld [vmem:[%s232 + $0xd8] sm:$0xff]
        %v440 = vld [vmem:[%s232 + $0xe0] sm:$0xff]
        %v441 = vld [vmem:[%s232 + $0xe8] sm:$0xff]
        %v442 = vld [vmem:[%s232 + $0xf0] sm:$0xff]
        %v443 = vld [vmem:[%s232 + $0xf8] sm:$0xff]
        %v444 = vld [vmem:[%s232 + $0x100] sm:$0xff]
        %v445 = vld [vmem:[%s232 + $0x108] sm:$0xff]
        %v446 = vld [vmem:[%s232 + $0x110] sm:$0xff]
        %v447 = vld [vmem:[%s232 + $0x118] sm:$0xff]
        %v448 = vld [vmem:[%s232 + $0x120] sm:$0xff]
        %v449 = vld [vmem:[%s232 + $0x128] sm:$0xff]
        %v450 = vld [vmem:[%s232 + $0x130] sm:$0xff]
        %v451 = vld [vmem:[%s232 + $0x138] sm:$0xff]
        %v452 = vld [vmem:[%s232 + $0x140] sm:$0xff]
        %v453 = vld [vmem:[%s232 + $0x148] sm:$0xff]
        %v454 = vld [vmem:[%s232 + $0x150] sm:$0xff]
        %v455 = vld [vmem:[%s232 + $0x158] sm:$0xff]
        %v456 = vld [vmem:[%s232 + $0x160] sm:$0xff]
        %v457 = vld [vmem:[%s232 + $0x168] sm:$0xff]
        %v458 = vld [vmem:[%s232 + $0x170] sm:$0xff]
        %v459 = vld [vmem:[%s232 + $0x178] sm:$0xff]
        %v460 = vld [vmem:[%s232 + $0x180] sm:$0xff]
        %v461 = vld [vmem:[%s232 + $0x188] sm:$0xff]
        %v462 = vld [vmem:[%s232 + $0x190] sm:$0xff]
        %v463 = vld [vmem:[%s232 + $0x198] sm:$0xff]
        %v464 = vld [vmem:[%s232 + $0x1a0] sm:$0xff]
        %v465 = vld [vmem:[%s232 + $0x1a8] sm:$0xff]
        %v466 = vld [vmem:[%s232 + $0x1b0] sm:$0xff]
        %v467 = vld [vmem:[%s232 + $0x1b8] sm:$0xff]
        %v468 = vld [vmem:[%s232 + $0x1c0] sm:$0xff]
        %v469 = vld [vmem:[%s232 + $0x1c8] sm:$0xff]
        %v470 = vld [vmem:[%s232 + $0x1d0] sm:$0xff]
        %v471 = vld [vmem:[%s232 + $0x1d8] sm:$0xff]
        %v472 = vld [vmem:[%s232 + $0x1e0] sm:$0xff]
        %v473 = vld [vmem:[%s232 + $0x1e8] sm:$0xff]
        %v474 = vld [vmem:[%s232 + $0x1f0] sm:$0xff]
        %v475 = vld [vmem:[%s232 + $0x1f8] sm:$0xff]
        %v476 = vld [vmem:[%s232 + $0x200] sm:$0xff]
        %v477 = vld [vmem:[%s232 + $0x208] sm:$0xff]
        %v478 = vld [vmem:[%s232 + $0x210] sm:$0xff]
        %v479 = vld [vmem:[%s232 + $0x218] sm:$0xff]
        %v480 = vld [vmem:[%s232 + $0x220] sm:$0xff]
        %v481 = vld [vmem:[%s232 + $0x228] sm:$0xff]
        %v482 = vld [vmem:[%s232 + $0x230] sm:$0xff]
        %v483 = vld [vmem:[%s232 + $0x238] sm:$0xff]
        %v484 = vld [vmem:[%s232 + $0x240] sm:$0xff]
        %v485 = vld [vmem:[%s232 + $0x248] sm:$0xff]
        %v486 = vld [vmem:[%s232 + $0x250] sm:$0xff]
        %v487 = vld [vmem:[%s232 + $0x258] sm:$0xff]
        %v488 = vld [vmem:[%s232 + $0x260] sm:$0xff]
        %v489 = vld [vmem:[%s232 + $0x268] sm:$0xff]
        %v490 = vld [vmem:[%s232 + $0x270] sm:$0xff]
        %v491 = vld [vmem:[%s232 + $0x278] sm:$0xff]
        %v492 = vld [vmem:[%s232 + $0x280] sm:$0xff]
        %v493 = vld [vmem:[%s232 + $0x288] sm:$0xff]
        %v494 = vld [vmem:[%s232 + $0x290] sm:$0xff]
        %v495 = vld [vmem:[%s232 + $0x298] sm:$0xff]
        %v496 = vld [vmem:[%s232 + $0x2a0] sm:$0xff]
        %v497 = vld [vmem:[%s232 + $0x2a8] sm:$0xff]
        %v498 = vld [vmem:[%s232 + $0x2b0] sm:$0xff]
        %v499 = vld [vmem:[%s232 + $0x2b8] sm:$0xff]
        %v500 = vld [vmem:[%s232 + $0x2c0] sm:$0xff]
        %v501 = vld [vmem:[%s232 + $0x2c8] sm:$0xff]
        %v502 = vld [vmem:[%s232 + $0x2d0] sm:$0xff]
        %v503 = vld [vmem:[%s232 + $0x2d8] sm:$0xff]
        %v504 = vld [vmem:[%s232 + $0x2e0] sm:$0xff]
        %v505 = vld [vmem:[%s232 + $0x2e8] sm:$0xff]
        %v506 = vld [vmem:[%s232 + $0x2f0] sm:$0xff]
        %v507 = vld [vmem:[%s232 + $0x2f8] sm:$0xff]
        %v508 = vld [vmem:[%s232 + $0x300] sm:$0xff]
        %v509 = vld [vmem:[%s232 + $0x308] sm:$0xff]
        %v510 = vld [vmem:[%s232 + $0x310] sm:$0xff]
        %v511 = vld [vmem:[%s232 + $0x318] sm:$0xff]
        %v512 = vld [vmem:[%s232 + $0x320] sm:$0xff]
        %v513 = vld [vmem:[%s232 + $0x328] sm:$0xff]
        %v514 = vld [vmem:[%s232 + $0x330] sm:$0xff]
        %v515 = vld [vmem:[%s232 + $0x338] sm:$0xff]
        %v516 = vld [vmem:[%s232 + $0x340] sm:$0xff]
        %v517 = vld [vmem:[%s232 + $0x348] sm:$0xff]
        %v518 = vld [vmem:[%s232 + $0x350] sm:$0xff]
        %v519 = vld [vmem:[%s232 + $0x358] sm:$0xff]
        %v520 = vld [vmem:[%s232 + $0x360] sm:$0xff]
        %v521 = vld [vmem:[%s232 + $0x368] sm:$0xff]
        %v522 = vld [vmem:[%s232 + $0x370] sm:$0xff]
        %v523 = vld [vmem:[%s232 + $0x378] sm:$0xff]
        %v524 = vld [vmem:[%s232 + $0x380] sm:$0xff]
        %v525 = vld [vmem:[%s232 + $0x388] sm:$0xff]
        %v526 = vld [vmem:[%s232 + $0x390] sm:$0xff]
        %v527 = vld [vmem:[%s232 + $0x398] sm:$0xff]
        %v528 = vld [vmem:[%s232 + $0x3a0] sm:$0xff]
        %v529 = vld [vmem:[%s232 + $0x3a8] sm:$0xff]
        %v530 = vld [vmem:[%s232 + $0x3b0] sm:$0xff]
        %v531 = vld [vmem:[%s232 + $0x3b8] sm:$0xff]
        %v532 = vld [vmem:[%s232 + $0x3c0] sm:$0xff]
        %v533 = vld [vmem:[%s232 + $0x3c8] sm:$0xff]
        %v534 = vld [vmem:[%s232 + $0x3d0] sm:$0xff]
        %v535 = vld [vmem:[%s232 + $0x3d8] sm:$0xff]
        %v536 = vld [vmem:[%s232 + $0x3e0] sm:$0xff]
        %v537 = vld [vmem:[%s232 + $0x3e8] sm:$0xff]
        %v538 = vld [vmem:[%s232 + $0x3f0] sm:$0xff]
        %v539 = vld [vmem:[%s232 + $0x3f8] sm:$0xff]
        %v540 = vld [vmem:[%s242] sm:$0xf]
        %v541 = vld [vmem:[%s242 + $0x4] sm:$0xf]
        %v542 = vld [vmem:[%s242 + $0x8] sm:$0xf]
        %v543 = vld [vmem:[%s242 + $0xc] sm:$0xf]
        %v544 = vld [vmem:[%s242 + $0x10] sm:$0xf]
        %v545 = vld [vmem:[%s242 + $0x14] sm:$0xf]
        %v546 = vld [vmem:[%s242 + $0x18] sm:$0xf]
        %v547 = vld [vmem:[%s242 + $0x1c] sm:$0xf]
        %v548 = vld [vmem:[%s242 + $0x20] sm:$0xf]
        %v549 = vld [vmem:[%s242 + $0x24] sm:$0xf]
        %v550 = vld [vmem:[%s242 + $0x28] sm:$0xf]
        %v551 = vld [vmem:[%s242 + $0x2c] sm:$0xf]
        %v552 = vld [vmem:[%s242 + $0x30] sm:$0xf]
        %v553 = vld [vmem:[%s242 + $0x34] sm:$0xf]
        %v554 = vld [vmem:[%s242 + $0x38] sm:$0xf]
        %v555 = vld [vmem:[%s242 + $0x3c] sm:$0xf]
        %v556 = vld [vmem:[%s242 + $0x40] sm:$0xf]
        %v557 = vld [vmem:[%s242 + $0x44] sm:$0xf]
        %v558 = vld [vmem:[%s242 + $0x48] sm:$0xf]
        %v559 = vld [vmem:[%s242 + $0x4c] sm:$0xf]
        %v560 = vld [vmem:[%s242 + $0x50] sm:$0xf]
        %v561 = vld [vmem:[%s242 + $0x54] sm:$0xf]
        %v562 = vld [vmem:[%s242 + $0x58] sm:$0xf]
        %v563 = vld [vmem:[%s242 + $0x5c] sm:$0xf]
        %v564 = vld [vmem:[%s242 + $0x60] sm:$0xf]
        %v565 = vld [vmem:[%s242 + $0x64] sm:$0xf]
        %v566 = vld [vmem:[%s242 + $0x68] sm:$0xf]
        %v567 = vld [vmem:[%s242 + $0x6c] sm:$0xf]
        %v568 = vld [vmem:[%s242 + $0x70] sm:$0xf]
        %v569 = vld [vmem:[%s242 + $0x74] sm:$0xf]
        %v570 = vld [vmem:[%s242 + $0x78] sm:$0xf]
        %v571 = vld [vmem:[%s242 + $0x7c] sm:$0xf]
        %v572 = vld [vmem:[%s242 + $0x80] sm:$0xf]
        %v573 = vld [vmem:[%s242 + $0x84] sm:$0xf]
        %v574 = vld [vmem:[%s242 + $0x88] sm:$0xf]
        %v575 = vld [vmem:[%s242 + $0x8c] sm:$0xf]
        %v576 = vld [vmem:[%s242 + $0x90] sm:$0xf]
        %v577 = vld [vmem:[%s242 + $0x94] sm:$0xf]
        %v578 = vld [vmem:[%s242 + $0x98] sm:$0xf]
        %v579 = vld [vmem:[%s242 + $0x9c] sm:$0xf]
        %v580 = vld [vmem:[%s242 + $0xa0] sm:$0xf]
        %v581 = vld [vmem:[%s242 + $0xa4] sm:$0xf]
        %v582 = vld [vmem:[%s242 + $0xa8] sm:$0xf]
        %v583 = vld [vmem:[%s242 + $0xac] sm:$0xf]
        %v584 = vld [vmem:[%s242 + $0xb0] sm:$0xf]
        %v585 = vld [vmem:[%s242 + $0xb4] sm:$0xf]
        %v586 = vld [vmem:[%s242 + $0xb8] sm:$0xf]
        %v587 = vld [vmem:[%s242 + $0xbc] sm:$0xf]
        %v588 = vld [vmem:[%s242 + $0xc0] sm:$0xf]
        %v589 = vld [vmem:[%s242 + $0xc4] sm:$0xf]
        %v590 = vld [vmem:[%s242 + $0xc8] sm:$0xf]
        %v591 = vld [vmem:[%s242 + $0xcc] sm:$0xf]
        %v592 = vld [vmem:[%s242 + $0xd0] sm:$0xf]
        %v593 = vld [vmem:[%s242 + $0xd4] sm:$0xf]
        %v594 = vld [vmem:[%s242 + $0xd8] sm:$0xf]
        %v595 = vld [vmem:[%s242 + $0xdc] sm:$0xf]
        %v596 = vld [vmem:[%s242 + $0xe0] sm:$0xf]
        %v597 = vld [vmem:[%s242 + $0xe4] sm:$0xf]
        %v598 = vld [vmem:[%s242 + $0xe8] sm:$0xf]
        %v599 = vld [vmem:[%s242 + $0xec] sm:$0xf]
        %v600 = vld [vmem:[%s242 + $0xf0] sm:$0xf]
        %v601 = vld [vmem:[%s242 + $0xf4] sm:$0xf]
        %v602 = vld [vmem:[%s242 + $0xf8] sm:$0xf]
        %v603 = vld [vmem:[%s242 + $0xfc] sm:$0xf]
        %v732 = vunpack.c.l.b16 %v412
        %v733 = vunpack.c.h.b16 %v412
        %v734 = vunpack.c.l.b16 %v413
        %v735 = vunpack.c.h.b16 %v413
        %v736 = vunpack.c.l.b16 %v414
        %v737 = vunpack.c.h.b16 %v414
        %v738 = vunpack.c.l.b16 %v415
        %v739 = vunpack.c.h.b16 %v415
        %v740 = vunpack.c.l.b16 %v416
        %v741 = vunpack.c.h.b16 %v416
        %v742 = vunpack.c.l.b16 %v417
        %v743 = vunpack.c.h.b16 %v417
        %v744 = vunpack.c.l.b16 %v418
        %v745 = vunpack.c.h.b16 %v418
        %v746 = vunpack.c.l.b16 %v419
        %v747 = vunpack.c.h.b16 %v419
        %v748 = vunpack.c.l.b16 %v420
        %v749 = vunpack.c.h.b16 %v420
        %v750 = vunpack.c.l.b16 %v421
        %v751 = vunpack.c.h.b16 %v421
        %v752 = vunpack.c.l.b16 %v422
        %v753 = vunpack.c.h.b16 %v422
        %v754 = vunpack.c.l.b16 %v423
        %v755 = vunpack.c.h.b16 %v423
        %v756 = vunpack.c.l.b16 %v424
        %v757 = vunpack.c.h.b16 %v424
        %v758 = vunpack.c.l.b16 %v425
        %v759 = vunpack.c.h.b16 %v425
        %v760 = vunpack.c.l.b16 %v426
        %v761 = vunpack.c.h.b16 %v426
        %v762 = vunpack.c.l.b16 %v427
        %v763 = vunpack.c.h.b16 %v427
        %v764 = vunpack.c.l.b16 %v428
        %v765 = vunpack.c.h.b16 %v428
        %v766 = vunpack.c.l.b16 %v429
        %v767 = vunpack.c.h.b16 %v429
        %v768 = vunpack.c.l.b16 %v430
        %v769 = vunpack.c.h.b16 %v430
        %v770 = vunpack.c.l.b16 %v431
        %v771 = vunpack.c.h.b16 %v431
        %v772 = vunpack.c.l.b16 %v432
        %v773 = vunpack.c.h.b16 %v432
        %v774 = vunpack.c.l.b16 %v433
        %v775 = vunpack.c.h.b16 %v433
        %v776 = vunpack.c.l.b16 %v434
        %v777 = vunpack.c.h.b16 %v434
        %v778 = vunpack.c.l.b16 %v435
        %v779 = vunpack.c.h.b16 %v435
        %v780 = vunpack.c.l.b16 %v436
        %v781 = vunpack.c.h.b16 %v436
        %v782 = vunpack.c.l.b16 %v437
        %v783 = vunpack.c.h.b16 %v437
        %v784 = vunpack.c.l.b16 %v438
        %v785 = vunpack.c.h.b16 %v438
        %v786 = vunpack.c.l.b16 %v439
        %v787 = vunpack.c.h.b16 %v439
        %v788 = vunpack.c.l.b16 %v440
        %v789 = vunpack.c.h.b16 %v440
        %v790 = vunpack.c.l.b16 %v441
        %v791 = vunpack.c.h.b16 %v441
        %v792 = vunpack.c.l.b16 %v442
        %v793 = vunpack.c.h.b16 %v442
        %v794 = vunpack.c.l.b16 %v443
        %v795 = vunpack.c.h.b16 %v443
        %v796 = vunpack.c.l.b16 %v444
        %v797 = vunpack.c.h.b16 %v444
        %v798 = vunpack.c.l.b16 %v445
        %v799 = vunpack.c.h.b16 %v445
        %v800 = vunpack.c.l.b16 %v446
        %v801 = vunpack.c.h.b16 %v446
        %v802 = vunpack.c.l.b16 %v447
        %v803 = vunpack.c.h.b16 %v447
        %v804 = vunpack.c.l.b16 %v448
        %v805 = vunpack.c.h.b16 %v448
        %v806 = vunpack.c.l.b16 %v449
        %v807 = vunpack.c.h.b16 %v449
        %v808 = vunpack.c.l.b16 %v450
        %v809 = vunpack.c.h.b16 %v450
        %v810 = vunpack.c.l.b16 %v451
        %v811 = vunpack.c.h.b16 %v451
        %v812 = vunpack.c.l.b16 %v452
        %v813 = vunpack.c.h.b16 %v452
        %v814 = vunpack.c.l.b16 %v453
        %v815 = vunpack.c.h.b16 %v453
        %v816 = vunpack.c.l.b16 %v454
        %v817 = vunpack.c.h.b16 %v454
        %v818 = vunpack.c.l.b16 %v455
        %v819 = vunpack.c.h.b16 %v455
        %v820 = vunpack.c.l.b16 %v456
        %v821 = vunpack.c.h.b16 %v456
        %v822 = vunpack.c.l.b16 %v457
        %v823 = vunpack.c.h.b16 %v457
        %v824 = vunpack.c.l.b16 %v458
        %v825 = vunpack.c.h.b16 %v458
        %v826 = vunpack.c.l.b16 %v459
        %v827 = vunpack.c.h.b16 %v459
        %v828 = vunpack.c.l.b16 %v460
        %v829 = vunpack.c.h.b16 %v460
        %v830 = vunpack.c.l.b16 %v461
        %v831 = vunpack.c.h.b16 %v461
        %v832 = vunpack.c.l.b16 %v462
        %v833 = vunpack.c.h.b16 %v462
        %v834 = vunpack.c.l.b16 %v463
        %v835 = vunpack.c.h.b16 %v463
        %v836 = vunpack.c.l.b16 %v464
        %v837 = vunpack.c.h.b16 %v464
        %v838 = vunpack.c.l.b16 %v465
        %v839 = vunpack.c.h.b16 %v465
        %v840 = vunpack.c.l.b16 %v466
        %v841 = vunpack.c.h.b16 %v466
        %v842 = vunpack.c.l.b16 %v467
        %v843 = vunpack.c.h.b16 %v467
        %v844 = vunpack.c.l.b16 %v468
        %v845 = vunpack.c.h.b16 %v468
        %v846 = vunpack.c.l.b16 %v469
        %v847 = vunpack.c.h.b16 %v469
        %v848 = vunpack.c.l.b16 %v470
        %v849 = vunpack.c.h.b16 %v470
        %v850 = vunpack.c.l.b16 %v471
        %v851 = vunpack.c.h.b16 %v471
        %v852 = vunpack.c.l.b16 %v472
        %v853 = vunpack.c.h.b16 %v472
        %v854 = vunpack.c.l.b16 %v473
        %v855 = vunpack.c.h.b16 %v473
        %v856 = vunpack.c.l.b16 %v474
        %v857 = vunpack.c.h.b16 %v474
        %v858 = vunpack.c.l.b16 %v475
        %v859 = vunpack.c.h.b16 %v475
        %v860 = vunpack.c.l.b16 %v476
        %v861 = vunpack.c.h.b16 %v476
        %v862 = vunpack.c.l.b16 %v477
        %v863 = vunpack.c.h.b16 %v477
        %v864 = vunpack.c.l.b16 %v478
        %v865 = vunpack.c.h.b16 %v478
        %v866 = vunpack.c.l.b16 %v479
        %v867 = vunpack.c.h.b16 %v479
        %v868 = vunpack.c.l.b16 %v480
        %v869 = vunpack.c.h.b16 %v480
        %v870 = vunpack.c.l.b16 %v481
        %v871 = vunpack.c.h.b16 %v481
        %v872 = vunpack.c.l.b16 %v482
        %v873 = vunpack.c.h.b16 %v482
        %v874 = vunpack.c.l.b16 %v483
        %v875 = vunpack.c.h.b16 %v483
        %v876 = vunpack.c.l.b16 %v484
        %v877 = vunpack.c.h.b16 %v484
        %v878 = vunpack.c.l.b16 %v485
        %v879 = vunpack.c.h.b16 %v485
        %v880 = vunpack.c.l.b16 %v486
        %v881 = vunpack.c.h.b16 %v486
        %v882 = vunpack.c.l.b16 %v487
        %v883 = vunpack.c.h.b16 %v487
        %v884 = vunpack.c.l.b16 %v488
        %v885 = vunpack.c.h.b16 %v488
        %v886 = vunpack.c.l.b16 %v489
        %v887 = vunpack.c.h.b16 %v489
        %v888 = vunpack.c.l.b16 %v490
        %v889 = vunpack.c.h.b16 %v490
        %v890 = vunpack.c.l.b16 %v491
        %v891 = vunpack.c.h.b16 %v491
        %v892 = vunpack.c.l.b16 %v492
        %v893 = vunpack.c.h.b16 %v492
        %v894 = vunpack.c.l.b16 %v493
        %v895 = vunpack.c.h.b16 %v493
        %v896 = vunpack.c.l.b16 %v494
        %v897 = vunpack.c.h.b16 %v494
        %v898 = vunpack.c.l.b16 %v495
        %v899 = vunpack.c.h.b16 %v495
        %v900 = vunpack.c.l.b16 %v496
        %v901 = vunpack.c.h.b16 %v496
        %v902 = vunpack.c.l.b16 %v497
        %v903 = vunpack.c.h.b16 %v497
        %v904 = vunpack.c.l.b16 %v498
        %v905 = vunpack.c.h.b16 %v498
        %v906 = vunpack.c.l.b16 %v499
        %v907 = vunpack.c.h.b16 %v499
        %v908 = vunpack.c.l.b16 %v500
        %v909 = vunpack.c.h.b16 %v500
        %v910 = vunpack.c.l.b16 %v501
        %v911 = vunpack.c.h.b16 %v501
        %v912 = vunpack.c.l.b16 %v502
        %v913 = vunpack.c.h.b16 %v502
        %v914 = vunpack.c.l.b16 %v503
        %v915 = vunpack.c.h.b16 %v503
        %v916 = vunpack.c.l.b16 %v504
        %v917 = vunpack.c.h.b16 %v504
        %v918 = vunpack.c.l.b16 %v505
        %v919 = vunpack.c.h.b16 %v505
        %v920 = vunpack.c.l.b16 %v506
        %v921 = vunpack.c.h.b16 %v506
        %v922 = vunpack.c.l.b16 %v507
        %v923 = vunpack.c.h.b16 %v507
        %v924 = vunpack.c.l.b16 %v508
        %v925 = vunpack.c.h.b16 %v508
        %v926 = vunpack.c.l.b16 %v509
        %v927 = vunpack.c.h.b16 %v509
        %v928 = vunpack.c.l.b16 %v510
        %v929 = vunpack.c.h.b16 %v510
        %v930 = vunpack.c.l.b16 %v511
        %v931 = vunpack.c.h.b16 %v511
        %v932 = vunpack.c.l.b16 %v512
        %v933 = vunpack.c.h.b16 %v512
        %v934 = vunpack.c.l.b16 %v513
        %v935 = vunpack.c.h.b16 %v513
        %v936 = vunpack.c.l.b16 %v514
        %v937 = vunpack.c.h.b16 %v514
        %v938 = vunpack.c.l.b16 %v515
        %v939 = vunpack.c.h.b16 %v515
        %v940 = vunpack.c.l.b16 %v516
        %v941 = vunpack.c.h.b16 %v516
        %v942 = vunpack.c.l.b16 %v517
        %v943 = vunpack.c.h.b16 %v517
        %v944 = vunpack.c.l.b16 %v518
        %v945 = vunpack.c.h.b16 %v518
        %v946 = vunpack.c.l.b16 %v519
        %v947 = vunpack.c.h.b16 %v519
        %v948 = vunpack.c.l.b16 %v520
        %v949 = vunpack.c.h.b16 %v520
        %v950 = vunpack.c.l.b16 %v521
        %v951 = vunpack.c.h.b16 %v521
        %v952 = vunpack.c.l.b16 %v522
        %v953 = vunpack.c.h.b16 %v522
        %v954 = vunpack.c.l.b16 %v523
        %v955 = vunpack.c.h.b16 %v523
        %v956 = vunpack.c.l.b16 %v524
        %v957 = vunpack.c.h.b16 %v524
        %v958 = vunpack.c.l.b16 %v525
        %v959 = vunpack.c.h.b16 %v525
        %v960 = vunpack.c.l.b16 %v526
        %v961 = vunpack.c.h.b16 %v526
        %v962 = vunpack.c.l.b16 %v527
        %v963 = vunpack.c.h.b16 %v527
        %v964 = vunpack.c.l.b16 %v528
        %v965 = vunpack.c.h.b16 %v528
        %v966 = vunpack.c.l.b16 %v529
        %v967 = vunpack.c.h.b16 %v529
        %v968 = vunpack.c.l.b16 %v530
        %v969 = vunpack.c.h.b16 %v530
        %v970 = vunpack.c.l.b16 %v531
        %v971 = vunpack.c.h.b16 %v531
        %v972 = vunpack.c.l.b16 %v532
        %v973 = vunpack.c.h.b16 %v532
        %v974 = vunpack.c.l.b16 %v533
        %v975 = vunpack.c.h.b16 %v533
        %v976 = vunpack.c.l.b16 %v534
        %v977 = vunpack.c.h.b16 %v534
        %v978 = vunpack.c.l.b16 %v535
        %v979 = vunpack.c.h.b16 %v535
        %v980 = vunpack.c.l.b16 %v536
        %v981 = vunpack.c.h.b16 %v536
        %v982 = vunpack.c.l.b16 %v537
        %v983 = vunpack.c.h.b16 %v537
        %v984 = vunpack.c.l.b16 %v538
        %v985 = vunpack.c.h.b16 %v538
        %v986 = vunpack.c.l.b16 %v539
        %v987 = vunpack.c.h.b16 %v539
        %v988 = vpack.c.b16 %v736, %v732
        %v989 = vpack.c.b16 %v737, %v733
        %v990 = vpack.c.b16 %v738, %v734
        %v991 = vpack.c.b16 %v739, %v735
        %v992 = vpack.c.b16 %v744, %v740
        %v993 = vpack.c.b16 %v745, %v741
        %v994 = vpack.c.b16 %v746, %v742
        %v995 = vpack.c.b16 %v747, %v743
        %v996 = vpack.c.b16 %v752, %v748
        %v997 = vpack.c.b16 %v753, %v749
        %v998 = vpack.c.b16 %v754, %v750
        %v999 = vpack.c.b16 %v755, %v751
        %v1000 = vpack.c.b16 %v760, %v756
        %v1001 = vpack.c.b16 %v761, %v757
        %v1002 = vpack.c.b16 %v762, %v758
        %v1003 = vpack.c.b16 %v763, %v759
        %v1004 = vpack.c.b16 %v768, %v764
        %v1005 = vpack.c.b16 %v769, %v765
        %v1006 = vpack.c.b16 %v770, %v766
        %v1007 = vpack.c.b16 %v771, %v767
        %v1008 = vpack.c.b16 %v776, %v772
        %v1009 = vpack.c.b16 %v777, %v773
        %v1010 = vpack.c.b16 %v778, %v774
        %v1011 = vpack.c.b16 %v779, %v775
        %v1012 = vpack.c.b16 %v784, %v780
        %v1013 = vpack.c.b16 %v785, %v781
        %v1014 = vpack.c.b16 %v786, %v782
        %v1015 = vpack.c.b16 %v787, %v783
        %v1016 = vpack.c.b16 %v792, %v788
        %v1017 = vpack.c.b16 %v793, %v789
        %v1018 = vpack.c.b16 %v794, %v790
        %v1019 = vpack.c.b16 %v795, %v791
        %v1020 = vpack.c.b16 %v800, %v796
        %v1021 = vpack.c.b16 %v801, %v797
        %v1022 = vpack.c.b16 %v802, %v798
        %v1023 = vpack.c.b16 %v803, %v799
        %v1024 = vpack.c.b16 %v808, %v804
        %v1025 = vpack.c.b16 %v809, %v805
        %v1026 = vpack.c.b16 %v810, %v806
        %v1027 = vpack.c.b16 %v811, %v807
        %v1028 = vpack.c.b16 %v816, %v812
        %v1029 = vpack.c.b16 %v817, %v813
        %v1030 = vpack.c.b16 %v818, %v814
        %v1031 = vpack.c.b16 %v819, %v815
        %v1032 = vpack.c.b16 %v824, %v820
        %v1033 = vpack.c.b16 %v825, %v821
        %v1034 = vpack.c.b16 %v826, %v822
        %v1035 = vpack.c.b16 %v827, %v823
        %v1036 = vpack.c.b16 %v832, %v828
        %v1037 = vpack.c.b16 %v833, %v829
        %v1038 = vpack.c.b16 %v834, %v830
        %v1039 = vpack.c.b16 %v835, %v831
        %v1040 = vpack.c.b16 %v840, %v836
        %v1041 = vpack.c.b16 %v841, %v837
        %v1042 = vpack.c.b16 %v842, %v838
        %v1043 = vpack.c.b16 %v843, %v839
        %v1044 = vpack.c.b16 %v848, %v844
        %v1045 = vpack.c.b16 %v849, %v845
        %v1046 = vpack.c.b16 %v850, %v846
        %v1047 = vpack.c.b16 %v851, %v847
        %v1048 = vpack.c.b16 %v856, %v852
        %v1049 = vpack.c.b16 %v857, %v853
        %v1050 = vpack.c.b16 %v858, %v854
        %v1051 = vpack.c.b16 %v859, %v855
        %v1052 = vpack.c.b16 %v864, %v860
        %v1053 = vpack.c.b16 %v865, %v861
        %v1054 = vpack.c.b16 %v866, %v862
        %v1055 = vpack.c.b16 %v867, %v863
        %v1056 = vpack.c.b16 %v872, %v868
        %v1057 = vpack.c.b16 %v873, %v869
        %v1058 = vpack.c.b16 %v874, %v870
        %v1059 = vpack.c.b16 %v875, %v871
        %v1060 = vpack.c.b16 %v880, %v876
        %v1061 = vpack.c.b16 %v881, %v877
        %v1062 = vpack.c.b16 %v882, %v878
        %v1063 = vpack.c.b16 %v883, %v879
        %v1064 = vpack.c.b16 %v888, %v884
        %v1065 = vpack.c.b16 %v889, %v885
        %v1066 = vpack.c.b16 %v890, %v886
        %v1067 = vpack.c.b16 %v891, %v887
        %v1068 = vpack.c.b16 %v896, %v892
        %v1069 = vpack.c.b16 %v897, %v893
        %v1070 = vpack.c.b16 %v898, %v894
        %v1071 = vpack.c.b16 %v899, %v895
        %v1072 = vpack.c.b16 %v904, %v900
        %v1073 = vpack.c.b16 %v905, %v901
        %v1074 = vpack.c.b16 %v906, %v902
        %v1075 = vpack.c.b16 %v907, %v903
        %v1076 = vpack.c.b16 %v912, %v908
        %v1077 = vpack.c.b16 %v913, %v909
        %v1078 = vpack.c.b16 %v914, %v910
        %v1079 = vpack.c.b16 %v915, %v911
        %v1080 = vpack.c.b16 %v920, %v916
        %v1081 = vpack.c.b16 %v921, %v917
        %v1082 = vpack.c.b16 %v922, %v918
        %v1083 = vpack.c.b16 %v923, %v919
        %v1084 = vpack.c.b16 %v928, %v924
        %v1085 = vpack.c.b16 %v929, %v925
        %v1086 = vpack.c.b16 %v930, %v926
        %v1087 = vpack.c.b16 %v931, %v927
        %v1088 = vpack.c.b16 %v936, %v932
        %v1089 = vpack.c.b16 %v937, %v933
        %v1090 = vpack.c.b16 %v938, %v934
        %v1091 = vpack.c.b16 %v939, %v935
        %v1092 = vpack.c.b16 %v944, %v940
        %v1093 = vpack.c.b16 %v945, %v941
        %v1094 = vpack.c.b16 %v946, %v942
        %v1095 = vpack.c.b16 %v947, %v943
        %v1096 = vpack.c.b16 %v952, %v948
        %v1097 = vpack.c.b16 %v953, %v949
        %v1098 = vpack.c.b16 %v954, %v950
        %v1099 = vpack.c.b16 %v955, %v951
        %v1100 = vpack.c.b16 %v960, %v956
        %v1101 = vpack.c.b16 %v961, %v957
        %v1102 = vpack.c.b16 %v962, %v958
        %v1103 = vpack.c.b16 %v963, %v959
        %v1104 = vpack.c.b16 %v968, %v964
        %v1105 = vpack.c.b16 %v969, %v965
        %v1106 = vpack.c.b16 %v970, %v966
        %v1107 = vpack.c.b16 %v971, %v967
        %v1108 = vpack.c.b16 %v976, %v972
        %v1109 = vpack.c.b16 %v977, %v973
        %v1110 = vpack.c.b16 %v978, %v974
        %v1111 = vpack.c.b16 %v979, %v975
        %v1112 = vpack.c.b16 %v984, %v980
        %v1113 = vpack.c.b16 %v985, %v981
        %v1114 = vpack.c.b16 %v986, %v982
        %v1115 = vpack.c.b16 %v987, %v983
        %v1308 = vunpack.c.l.b16 %v540
        %v1309 = vunpack.c.l.b16 %v541
        %v1310 = vunpack.c.l.b16 %v542
        %v1311 = vunpack.c.l.b16 %v543
        %v1312 = vunpack.c.l.b16 %v544
        %v1313 = vunpack.c.l.b16 %v545
        %v1314 = vunpack.c.l.b16 %v546
        %v1315 = vunpack.c.l.b16 %v547
        %v1316 = vunpack.c.l.b16 %v548
        %v1317 = vunpack.c.l.b16 %v549
        %v1318 = vunpack.c.l.b16 %v550
        %v1319 = vunpack.c.l.b16 %v551
        %v1320 = vunpack.c.l.b16 %v552
        %v1321 = vunpack.c.l.b16 %v553
        %v1322 = vunpack.c.l.b16 %v554
        %v1323 = vunpack.c.l.b16 %v555
        %v1324 = vunpack.c.l.b16 %v556
        %v1325 = vunpack.c.l.b16 %v557
        %v1326 = vunpack.c.l.b16 %v558
        %v1327 = vunpack.c.l.b16 %v559
        %v1328 = vunpack.c.l.b16 %v560
        %v1329 = vunpack.c.l.b16 %v561
        %v1330 = vunpack.c.l.b16 %v562
        %v1331 = vunpack.c.l.b16 %v563
        %v1332 = vunpack.c.l.b16 %v564
        %v1333 = vunpack.c.l.b16 %v565
        %v1334 = vunpack.c.l.b16 %v566
        %v1335 = vunpack.c.l.b16 %v567
        %v1336 = vunpack.c.l.b16 %v568
        %v1337 = vunpack.c.l.b16 %v569
        %v1338 = vunpack.c.l.b16 %v570
        %v1339 = vunpack.c.l.b16 %v571
        %v1340 = vunpack.c.l.b16 %v572
        %v1341 = vunpack.c.l.b16 %v573
        %v1342 = vunpack.c.l.b16 %v574
        %v1343 = vunpack.c.l.b16 %v575
        %v1344 = vunpack.c.l.b16 %v576
        %v1345 = vunpack.c.l.b16 %v577
        %v1346 = vunpack.c.l.b16 %v578
        %v1347 = vunpack.c.l.b16 %v579
        %v1348 = vunpack.c.l.b16 %v580
        %v1349 = vunpack.c.l.b16 %v581
        %v1350 = vunpack.c.l.b16 %v582
        %v1351 = vunpack.c.l.b16 %v583
        %v1352 = vunpack.c.l.b16 %v584
        %v1353 = vunpack.c.l.b16 %v585
        %v1354 = vunpack.c.l.b16 %v586
        %v1355 = vunpack.c.l.b16 %v587
        %v1356 = vunpack.c.l.b16 %v588
        %v1357 = vunpack.c.l.b16 %v589
        %v1358 = vunpack.c.l.b16 %v590
        %v1359 = vunpack.c.l.b16 %v591
        %v1360 = vunpack.c.l.b16 %v592
        %v1361 = vunpack.c.l.b16 %v593
        %v1362 = vunpack.c.l.b16 %v594
        %v1363 = vunpack.c.l.b16 %v595
        %v1364 = vunpack.c.l.b16 %v596
        %v1365 = vunpack.c.l.b16 %v597
        %v1366 = vunpack.c.l.b16 %v598
        %v1367 = vunpack.c.l.b16 %v599
        %v1368 = vunpack.c.l.b16 %v600
        %v1369 = vunpack.c.l.b16 %v601
        %v1370 = vunpack.c.l.b16 %v602
        %v1371 = vunpack.c.l.b16 %v603
        %v1372 = vpack.c.b16 %v1309, %v1308
        %v1373 = vpack.c.b16 %v1311, %v1310
        %v1374 = vpack.c.b16 %v1313, %v1312
        %v1375 = vpack.c.b16 %v1315, %v1314
        %v1376 = vpack.c.b16 %v1317, %v1316
        %v1377 = vpack.c.b16 %v1319, %v1318
        %v1378 = vpack.c.b16 %v1321, %v1320
        %v1379 = vpack.c.b16 %v1323, %v1322
        %v1380 = vpack.c.b16 %v1325, %v1324
        %v1381 = vpack.c.b16 %v1327, %v1326
        %v1382 = vpack.c.b16 %v1329, %v1328
        %v1383 = vpack.c.b16 %v1331, %v1330
        %v1384 = vpack.c.b16 %v1333, %v1332
        %v1385 = vpack.c.b16 %v1335, %v1334
        %v1386 = vpack.c.b16 %v1337, %v1336
        %v1387 = vpack.c.b16 %v1339, %v1338
        %v1388 = vpack.c.b16 %v1341, %v1340
        %v1389 = vpack.c.b16 %v1343, %v1342
        %v1390 = vpack.c.b16 %v1345, %v1344
        %v1391 = vpack.c.b16 %v1347, %v1346
        %v1392 = vpack.c.b16 %v1349, %v1348
        %v1393 = vpack.c.b16 %v1351, %v1350
        %v1394 = vpack.c.b16 %v1353, %v1352
        %v1395 = vpack.c.b16 %v1355, %v1354
        %v1396 = vpack.c.b16 %v1357, %v1356
        %v1397 = vpack.c.b16 %v1359, %v1358
        %v1398 = vpack.c.b16 %v1361, %v1360
        %v1399 = vpack.c.b16 %v1363, %v1362
        %v1400 = vpack.c.b16 %v1365, %v1364
        %v1401 = vpack.c.b16 %v1367, %v1366
        %v1402 = vpack.c.b16 %v1369, %v1368
        %v1403 = vpack.c.b16 %v1371, %v1370
        %1436 = vmatpush.bf16.msra.mxu0 %v1379
        %1437 = vmatpush.bf16.msra.mxu0 %v1378
        %1438 = vmatpush.bf16.msra.mxu0 %v1377
        %1439 = vmatpush.bf16.msra.mxu0 %v1376
        %1440 = vmatpush.bf16.msra.mxu0 %v1375
        %1441 = vmatpush.bf16.msra.mxu0 %v1374
        %1442 = vmatpush.bf16.msra.mxu0 %v1373
        %1443 = vmatpush.bf16.msra.mxu0 %v1372
        %1444 = vmatmul.bf16.gmra.mxu0 %v988
        %v1445 = vpop.f32.mrf.mxu0
        %v1446 = vadd.f32 0.0, %v1445
        %v1447 = vpop.f32.mrf.mxu0
        %v1448 = vadd.f32 0.0, %v1447
        %1449 = vmatmul.bf16.gmra.mxu0 %v992
        %v1450 = vpop.f32.mrf.mxu0
        %v1451 = vadd.f32 0.0, %v1450
        %v1452 = vpop.f32.mrf.mxu0
        %v1453 = vadd.f32 0.0, %v1452
        %1454 = vmatmul.bf16.gmra.mxu0 %v996
        %v1455 = vpop.f32.mrf.mxu0
        %v1456 = vadd.f32 0.0, %v1455
        %v1457 = vpop.f32.mrf.mxu0
        %v1458 = vadd.f32 0.0, %v1457
        %1459 = vmatmul.bf16.gmra.mxu0 %v1000
        %v1460 = vpop.f32.mrf.mxu0
        %v1461 = vadd.f32 0.0, %v1460
        %v1462 = vpop.f32.mrf.mxu0
        %v1463 = vadd.f32 0.0, %v1462
        %1464 = vmatmul.bf16.gmra.mxu0 %v1004
        %v1465 = vpop.f32.mrf.mxu0
        %v1466 = vadd.f32 0.0, %v1465
        %v1467 = vpop.f32.mrf.mxu0
        %v1468 = vadd.f32 0.0, %v1467
        %1469 = vmatmul.bf16.gmra.mxu0 %v1008
        %v1470 = vpop.f32.mrf.mxu0
        %v1471 = vadd.f32 0.0, %v1470
        %v1472 = vpop.f32.mrf.mxu0
        %v1473 = vadd.f32 0.0, %v1472
        %1474 = vmatmul.bf16.gmra.mxu0 %v1012
        %v1475 = vpop.f32.mrf.mxu0
        %v1476 = vadd.f32 0.0, %v1475
        %v1477 = vpop.f32.mrf.mxu0
        %v1478 = vadd.f32 0.0, %v1477
        %1479 = vmatmul.bf16.gmra.mxu0 %v1016
        %v1480 = vpop.f32.mrf.mxu0
        %v1481 = vadd.f32 0.0, %v1480
        %v1482 = vpop.f32.mrf.mxu0
        %v1483 = vadd.f32 0.0, %v1482
        %1484 = vmatmul.bf16.gmra.mxu0 %v1020
        %v1485 = vpop.f32.mrf.mxu0
        %v1486 = vadd.f32 0.0, %v1485
        %v1487 = vpop.f32.mrf.mxu0
        %v1488 = vadd.f32 0.0, %v1487
        %1489 = vmatmul.bf16.gmra.mxu0 %v1024
        %v1490 = vpop.f32.mrf.mxu0
        %v1491 = vadd.f32 0.0, %v1490
        %v1492 = vpop.f32.mrf.mxu0
        %v1493 = vadd.f32 0.0, %v1492
        %1494 = vmatmul.bf16.gmra.mxu0 %v1028
        %v1495 = vpop.f32.mrf.mxu0
        %v1496 = vadd.f32 0.0, %v1495
        %v1497 = vpop.f32.mrf.mxu0
        %v1498 = vadd.f32 0.0, %v1497
        %1499 = vmatmul.bf16.gmra.mxu0 %v1032
        %v1500 = vpop.f32.mrf.mxu0
        %v1501 = vadd.f32 0.0, %v1500
        %v1502 = vpop.f32.mrf.mxu0
        %v1503 = vadd.f32 0.0, %v1502
        %1504 = vmatmul.bf16.gmra.mxu0 %v1036
        %v1505 = vpop.f32.mrf.mxu0
        %v1506 = vadd.f32 0.0, %v1505
        %v1507 = vpop.f32.mrf.mxu0
        %v1508 = vadd.f32 0.0, %v1507
        %1509 = vmatmul.bf16.gmra.mxu0 %v1040
        %v1510 = vpop.f32.mrf.mxu0
        %v1511 = vadd.f32 0.0, %v1510
        %v1512 = vpop.f32.mrf.mxu0
        %v1513 = vadd.f32 0.0, %v1512
        %1514 = vmatmul.bf16.gmra.mxu0 %v1044
        %v1515 = vpop.f32.mrf.mxu0
        %v1516 = vadd.f32 0.0, %v1515
        %v1517 = vpop.f32.mrf.mxu0
        %v1518 = vadd.f32 0.0, %v1517
        %1519 = vmatmul.bf16.gmra.mxu0 %v1048
        %v1520 = vpop.f32.mrf.mxu0
        %v1521 = vadd.f32 0.0, %v1520
        %v1522 = vpop.f32.mrf.mxu0
        %v1523 = vadd.f32 0.0, %v1522
        %1524 = vmatmul.bf16.gmra.mxu0 %v1052
        %v1525 = vpop.f32.mrf.mxu0
        %v1526 = vadd.f32 0.0, %v1525
        %v1527 = vpop.f32.mrf.mxu0
        %v1528 = vadd.f32 0.0, %v1527
        %1529 = vmatmul.bf16.gmra.mxu0 %v1056
        %v1530 = vpop.f32.mrf.mxu0
        %v1531 = vadd.f32 0.0, %v1530
        %v1532 = vpop.f32.mrf.mxu0
        %v1533 = vadd.f32 0.0, %v1532
        %1534 = vmatmul.bf16.gmra.mxu0 %v1060
        %v1535 = vpop.f32.mrf.mxu0
        %v1536 = vadd.f32 0.0, %v1535
        %v1537 = vpop.f32.mrf.mxu0
        %v1538 = vadd.f32 0.0, %v1537
        %1539 = vmatmul.bf16.gmra.mxu0 %v1064
        %v1540 = vpop.f32.mrf.mxu0
        %v1541 = vadd.f32 0.0, %v1540
        %v1542 = vpop.f32.mrf.mxu0
        %v1543 = vadd.f32 0.0, %v1542
        %1544 = vmatmul.bf16.gmra.mxu0 %v1068
        %v1545 = vpop.f32.mrf.mxu0
        %v1546 = vadd.f32 0.0, %v1545
        %v1547 = vpop.f32.mrf.mxu0
        %v1548 = vadd.f32 0.0, %v1547
        %1549 = vmatmul.bf16.gmra.mxu0 %v1072
        %v1550 = vpop.f32.mrf.mxu0
        %v1551 = vadd.f32 0.0, %v1550
        %v1552 = vpop.f32.mrf.mxu0
        %v1553 = vadd.f32 0.0, %v1552
        %1554 = vmatmul.bf16.gmra.mxu0 %v1076
        %v1555 = vpop.f32.mrf.mxu0
        %v1556 = vadd.f32 0.0, %v1555
        %v1557 = vpop.f32.mrf.mxu0
        %v1558 = vadd.f32 0.0, %v1557
        %1559 = vmatmul.bf16.gmra.mxu0 %v1080
        %v1560 = vpop.f32.mrf.mxu0
        %v1561 = vadd.f32 0.0, %v1560
        %v1562 = vpop.f32.mrf.mxu0
        %v1563 = vadd.f32 0.0, %v1562
        %1564 = vmatmul.bf16.gmra.mxu0 %v1084
        %v1565 = vpop.f32.mrf.mxu0
        %v1566 = vadd.f32 0.0, %v1565
        %v1567 = vpop.f32.mrf.mxu0
        %v1568 = vadd.f32 0.0, %v1567
        %1569 = vmatmul.bf16.gmra.mxu0 %v1088
        %v1570 = vpop.f32.mrf.mxu0
        %v1571 = vadd.f32 0.0, %v1570
        %v1572 = vpop.f32.mrf.mxu0
        %v1573 = vadd.f32 0.0, %v1572
        %1574 = vmatmul.bf16.gmra.mxu0 %v1092
        %v1575 = vpop.f32.mrf.mxu0
        %v1576 = vadd.f32 0.0, %v1575
        %v1577 = vpop.f32.mrf.mxu0
        %v1578 = vadd.f32 0.0, %v1577
        %1579 = vmatmul.bf16.gmra.mxu0 %v1096
        %v1580 = vpop.f32.mrf.mxu0
        %v1581 = vadd.f32 0.0, %v1580
        %v1582 = vpop.f32.mrf.mxu0
        %v1583 = vadd.f32 0.0, %v1582
        %1584 = vmatmul.bf16.gmra.mxu0 %v1100
        %v1585 = vpop.f32.mrf.mxu0
        %v1586 = vadd.f32 0.0, %v1585
        %v1587 = vpop.f32.mrf.mxu0
        %v1588 = vadd.f32 0.0, %v1587
        %1589 = vmatmul.bf16.gmra.mxu0 %v1104
        %v1590 = vpop.f32.mrf.mxu0
        %v1591 = vadd.f32 0.0, %v1590
        %v1592 = vpop.f32.mrf.mxu0
        %v1593 = vadd.f32 0.0, %v1592
        %1594 = vmatmul.bf16.gmra.mxu0 %v1108
        %v1595 = vpop.f32.mrf.mxu0
        %v1596 = vadd.f32 0.0, %v1595
        %v1597 = vpop.f32.mrf.mxu0
        %v1598 = vadd.f32 0.0, %v1597
        %1599 = vmatmul.bf16.gmra.mxu0 %v1112
        %v1600 = vpop.f32.mrf.mxu0
        %v1601 = vadd.f32 0.0, %v1600
        %v1602 = vpop.f32.mrf.mxu0
        %v1603 = vadd.f32 0.0, %v1602
        %1604 = vdwg.mxu0
        %1605 = vmatpush.bf16.msra.mxu0 %v1387
        %1606 = vmatpush.bf16.msra.mxu0 %v1386
        %1607 = vmatpush.bf16.msra.mxu0 %v1385
        %1608 = vmatpush.bf16.msra.mxu0 %v1384
        %1609 = vmatpush.bf16.msra.mxu0 %v1383
        %1610 = vmatpush.bf16.msra.mxu0 %v1382
        %1611 = vmatpush.bf16.msra.mxu0 %v1381
        %1612 = vmatpush.bf16.msra.mxu0 %v1380
        %1613 = vmatmul.bf16.gmra.mxu0 %v989
        %v1614 = vpop.f32.mrf.mxu0
        %v1615 = vadd.f32 %v1446, %v1614
        %v1616 = vpop.f32.mrf.mxu0
        %v1617 = vadd.f32 %v1448, %v1616
        %1618 = vmatmul.bf16.gmra.mxu0 %v993
        %v1619 = vpop.f32.mrf.mxu0
        %v1620 = vadd.f32 %v1451, %v1619
        %v1621 = vpop.f32.mrf.mxu0
        %v1622 = vadd.f32 %v1453, %v1621
        %1623 = vmatmul.bf16.gmra.mxu0 %v997
        %v1624 = vpop.f32.mrf.mxu0
        %v1625 = vadd.f32 %v1456, %v1624
        %v1626 = vpop.f32.mrf.mxu0
        %v1627 = vadd.f32 %v1458, %v1626
        %1628 = vmatmul.bf16.gmra.mxu0 %v1001
        %v1629 = vpop.f32.mrf.mxu0
        %v1630 = vadd.f32 %v1461, %v1629
        %v1631 = vpop.f32.mrf.mxu0
        %v1632 = vadd.f32 %v1463, %v1631
        %1633 = vmatmul.bf16.gmra.mxu0 %v1005
        %v1634 = vpop.f32.mrf.mxu0
        %v1635 = vadd.f32 %v1466, %v1634
        %v1636 = vpop.f32.mrf.mxu0
        %v1637 = vadd.f32 %v1468, %v1636
        %1638 = vmatmul.bf16.gmra.mxu0 %v1009
        %v1639 = vpop.f32.mrf.mxu0
        %v1640 = vadd.f32 %v1471, %v1639
        %v1641 = vpop.f32.mrf.mxu0
        %v1642 = vadd.f32 %v1473, %v1641
        %1643 = vmatmul.bf16.gmra.mxu0 %v1013
        %v1644 = vpop.f32.mrf.mxu0
        %v1645 = vadd.f32 %v1476, %v1644
        %v1646 = vpop.f32.mrf.mxu0
        %v1647 = vadd.f32 %v1478, %v1646
        %1648 = vmatmul.bf16.gmra.mxu0 %v1017
        %v1649 = vpop.f32.mrf.mxu0
        %v1650 = vadd.f32 %v1481, %v1649
        %v1651 = vpop.f32.mrf.mxu0
        %v1652 = vadd.f32 %v1483, %v1651
        %1653 = vmatmul.bf16.gmra.mxu0 %v1021
        %v1654 = vpop.f32.mrf.mxu0
        %v1655 = vadd.f32 %v1486, %v1654
        %v1656 = vpop.f32.mrf.mxu0
        %v1657 = vadd.f32 %v1488, %v1656
        %1658 = vmatmul.bf16.gmra.mxu0 %v1025
        %v1659 = vpop.f32.mrf.mxu0
        %v1660 = vadd.f32 %v1491, %v1659
        %v1661 = vpop.f32.mrf.mxu0
        %v1662 = vadd.f32 %v1493, %v1661
        %1663 = vmatmul.bf16.gmra.mxu0 %v1029
        %v1664 = vpop.f32.mrf.mxu0
        %v1665 = vadd.f32 %v1496, %v1664
        %v1666 = vpop.f32.mrf.mxu0
        %v1667 = vadd.f32 %v1498, %v1666
        %1668 = vmatmul.bf16.gmra.mxu0 %v1033
        %v1669 = vpop.f32.mrf.mxu0
        %v1670 = vadd.f32 %v1501, %v1669
        %v1671 = vpop.f32.mrf.mxu0
        %v1672 = vadd.f32 %v1503, %v1671
        %1673 = vmatmul.bf16.gmra.mxu0 %v1037
        %v1674 = vpop.f32.mrf.mxu0
        %v1675 = vadd.f32 %v1506, %v1674
        %v1676 = vpop.f32.mrf.mxu0
        %v1677 = vadd.f32 %v1508, %v1676
        %1678 = vmatmul.bf16.gmra.mxu0 %v1041
        %v1679 = vpop.f32.mrf.mxu0
        %v1680 = vadd.f32 %v1511, %v1679
        %v1681 = vpop.f32.mrf.mxu0
        %v1682 = vadd.f32 %v1513, %v1681
        %1683 = vmatmul.bf16.gmra.mxu0 %v1045
        %v1684 = vpop.f32.mrf.mxu0
        %v1685 = vadd.f32 %v1516, %v1684
        %v1686 = vpop.f32.mrf.mxu0
        %v1687 = vadd.f32 %v1518, %v1686
        %1688 = vmatmul.bf16.gmra.mxu0 %v1049
        %v1689 = vpop.f32.mrf.mxu0
        %v1690 = vadd.f32 %v1521, %v1689
        %v1691 = vpop.f32.mrf.mxu0
        %v1692 = vadd.f32 %v1523, %v1691
        %1693 = vmatmul.bf16.gmra.mxu0 %v1053
        %v1694 = vpop.f32.mrf.mxu0
        %v1695 = vadd.f32 %v1526, %v1694
        %v1696 = vpop.f32.mrf.mxu0
        %v1697 = vadd.f32 %v1528, %v1696
        %1698 = vmatmul.bf16.gmra.mxu0 %v1057
        %v1699 = vpop.f32.mrf.mxu0
        %v1700 = vadd.f32 %v1531, %v1699
        %v1701 = vpop.f32.mrf.mxu0
        %v1702 = vadd.f32 %v1533, %v1701
        %1703 = vmatmul.bf16.gmra.mxu0 %v1061
        %v1704 = vpop.f32.mrf.mxu0
        %v1705 = vadd.f32 %v1536, %v1704
        %v1706 = vpop.f32.mrf.mxu0
        %v1707 = vadd.f32 %v1538, %v1706
        %1708 = vmatmul.bf16.gmra.mxu0 %v1065
        %v1709 = vpop.f32.mrf.mxu0
        %v1710 = vadd.f32 %v1541, %v1709
        %v1711 = vpop.f32.mrf.mxu0
        %v1712 = vadd.f32 %v1543, %v1711
        %1713 = vmatmul.bf16.gmra.mxu0 %v1069
        %v1714 = vpop.f32.mrf.mxu0
        %v1715 = vadd.f32 %v1546, %v1714
        %v1716 = vpop.f32.mrf.mxu0
        %v1717 = vadd.f32 %v1548, %v1716
        %1718 = vmatmul.bf16.gmra.mxu0 %v1073
        %v1719 = vpop.f32.mrf.mxu0
        %v1720 = vadd.f32 %v1551, %v1719
        %v1721 = vpop.f32.mrf.mxu0
        %v1722 = vadd.f32 %v1553, %v1721
        %1723 = vmatmul.bf16.gmra.mxu0 %v1077
        %v1724 = vpop.f32.mrf.mxu0
        %v1725 = vadd.f32 %v1556, %v1724
        %v1726 = vpop.f32.mrf.mxu0
        %v1727 = vadd.f32 %v1558, %v1726
        %1728 = vmatmul.bf16.gmra.mxu0 %v1081
        %v1729 = vpop.f32.mrf.mxu0
        %v1730 = vadd.f32 %v1561, %v1729
        %v1731 = vpop.f32.mrf.mxu0
        %v1732 = vadd.f32 %v1563, %v1731
        %1733 = vmatmul.bf16.gmra.mxu0 %v1085
        %v1734 = vpop.f32.mrf.mxu0
        %v1735 = vadd.f32 %v1566, %v1734
        %v1736 = vpop.f32.mrf.mxu0
        %v1737 = vadd.f32 %v1568, %v1736
        %1738 = vmatmul.bf16.gmra.mxu0 %v1089
        %v1739 = vpop.f32.mrf.mxu0
        %v1740 = vadd.f32 %v1571, %v1739
        %v1741 = vpop.f32.mrf.mxu0
        %v1742 = vadd.f32 %v1573, %v1741
        %1743 = vmatmul.bf16.gmra.mxu0 %v1093
        %v1744 = vpop.f32.mrf.mxu0
        %v1745 = vadd.f32 %v1576, %v1744
        %v1746 = vpop.f32.mrf.mxu0
        %v1747 = vadd.f32 %v1578, %v1746
        %1748 = vmatmul.bf16.gmra.mxu0 %v1097
        %v1749 = vpop.f32.mrf.mxu0
        %v1750 = vadd.f32 %v1581, %v1749
        %v1751 = vpop.f32.mrf.mxu0
        %v1752 = vadd.f32 %v1583, %v1751
        %1753 = vmatmul.bf16.gmra.mxu0 %v1101
        %v1754 = vpop.f32.mrf.mxu0
        %v1755 = vadd.f32 %v1586, %v1754
        %v1756 = vpop.f32.mrf.mxu0
        %v1757 = vadd.f32 %v1588, %v1756
        %1758 = vmatmul.bf16.gmra.mxu0 %v1105
        %v1759 = vpop.f32.mrf.mxu0
        %v1760 = vadd.f32 %v1591, %v1759
        %v1761 = vpop.f32.mrf.mxu0
        %v1762 = vadd.f32 %v1593, %v1761
        %1763 = vmatmul.bf16.gmra.mxu0 %v1109
        %v1764 = vpop.f32.mrf.mxu0
        %v1765 = vadd.f32 %v1596, %v1764
        %v1766 = vpop.f32.mrf.mxu0
        %v1767 = vadd.f32 %v1598, %v1766
        %1768 = vmatmul.bf16.gmra.mxu0 %v1113
        %v1769 = vpop.f32.mrf.mxu0
        %v1770 = vadd.f32 %v1601, %v1769
        %v1771 = vpop.f32.mrf.mxu0
        %v1772 = vadd.f32 %v1603, %v1771
        %1773 = vdwg.mxu0
        %1774 = vmatpush.bf16.msra.mxu0 %v1395
        %1775 = vmatpush.bf16.msra.mxu0 %v1394
        %1776 = vmatpush.bf16.msra.mxu0 %v1393
        %1777 = vmatpush.bf16.msra.mxu0 %v1392
        %1778 = vmatpush.bf16.msra.mxu0 %v1391
        %1779 = vmatpush.bf16.msra.mxu0 %v1390
        %1780 = vmatpush.bf16.msra.mxu0 %v1389
        %1781 = vmatpush.bf16.msra.mxu0 %v1388
        %1782 = vmatmul.bf16.gmra.mxu0 %v990
        %v1783 = vpop.f32.mrf.mxu0
        %v1784 = vadd.f32 %v1615, %v1783
        %v1785 = vpop.f32.mrf.mxu0
        %v1786 = vadd.f32 %v1617, %v1785
        %1787 = vmatmul.bf16.gmra.mxu0 %v994
        %v1788 = vpop.f32.mrf.mxu0
        %v1789 = vadd.f32 %v1620, %v1788
        %v1790 = vpop.f32.mrf.mxu0
        %v1791 = vadd.f32 %v1622, %v1790
        %1792 = vmatmul.bf16.gmra.mxu0 %v998
        %v1793 = vpop.f32.mrf.mxu0
        %v1794 = vadd.f32 %v1625, %v1793
        %v1795 = vpop.f32.mrf.mxu0
        %v1796 = vadd.f32 %v1627, %v1795
        %1797 = vmatmul.bf16.gmra.mxu0 %v1002
        %v1798 = vpop.f32.mrf.mxu0
        %v1799 = vadd.f32 %v1630, %v1798
        %v1800 = vpop.f32.mrf.mxu0
        %v1801 = vadd.f32 %v1632, %v1800
        %1802 = vmatmul.bf16.gmra.mxu0 %v1006
        %v1803 = vpop.f32.mrf.mxu0
        %v1804 = vadd.f32 %v1635, %v1803
        %v1805 = vpop.f32.mrf.mxu0
        %v1806 = vadd.f32 %v1637, %v1805
        %1807 = vmatmul.bf16.gmra.mxu0 %v1010
        %v1808 = vpop.f32.mrf.mxu0
        %v1809 = vadd.f32 %v1640, %v1808
        %v1810 = vpop.f32.mrf.mxu0
        %v1811 = vadd.f32 %v1642, %v1810
        %1812 = vmatmul.bf16.gmra.mxu0 %v1014
        %v1813 = vpop.f32.mrf.mxu0
        %v1814 = vadd.f32 %v1645, %v1813
        %v1815 = vpop.f32.mrf.mxu0
        %v1816 = vadd.f32 %v1647, %v1815
        %1817 = vmatmul.bf16.gmra.mxu0 %v1018
        %v1818 = vpop.f32.mrf.mxu0
        %v1819 = vadd.f32 %v1650, %v1818
        %v1820 = vpop.f32.mrf.mxu0
        %v1821 = vadd.f32 %v1652, %v1820
        %1822 = vmatmul.bf16.gmra.mxu0 %v1022
        %v1823 = vpop.f32.mrf.mxu0
        %v1824 = vadd.f32 %v1655, %v1823
        %v1825 = vpop.f32.mrf.mxu0
        %v1826 = vadd.f32 %v1657, %v1825
        %1827 = vmatmul.bf16.gmra.mxu0 %v1026
        %v1828 = vpop.f32.mrf.mxu0
        %v1829 = vadd.f32 %v1660, %v1828
        %v1830 = vpop.f32.mrf.mxu0
        %v1831 = vadd.f32 %v1662, %v1830
        %1832 = vmatmul.bf16.gmra.mxu0 %v1030
        %v1833 = vpop.f32.mrf.mxu0
        %v1834 = vadd.f32 %v1665, %v1833
        %v1835 = vpop.f32.mrf.mxu0
        %v1836 = vadd.f32 %v1667, %v1835
        %1837 = vmatmul.bf16.gmra.mxu0 %v1034
        %v1838 = vpop.f32.mrf.mxu0
        %v1839 = vadd.f32 %v1670, %v1838
        %v1840 = vpop.f32.mrf.mxu0
        %v1841 = vadd.f32 %v1672, %v1840
        %1842 = vmatmul.bf16.gmra.mxu0 %v1038
        %v1843 = vpop.f32.mrf.mxu0
        %v1844 = vadd.f32 %v1675, %v1843
        %v1845 = vpop.f32.mrf.mxu0
        %v1846 = vadd.f32 %v1677, %v1845
        %1847 = vmatmul.bf16.gmra.mxu0 %v1042
        %v1848 = vpop.f32.mrf.mxu0
        %v1849 = vadd.f32 %v1680, %v1848
        %v1850 = vpop.f32.mrf.mxu0
        %v1851 = vadd.f32 %v1682, %v1850
        %1852 = vmatmul.bf16.gmra.mxu0 %v1046
        %v1853 = vpop.f32.mrf.mxu0
        %v1854 = vadd.f32 %v1685, %v1853
        %v1855 = vpop.f32.mrf.mxu0
        %v1856 = vadd.f32 %v1687, %v1855
        %1857 = vmatmul.bf16.gmra.mxu0 %v1050
        %v1858 = vpop.f32.mrf.mxu0
        %v1859 = vadd.f32 %v1690, %v1858
        %v1860 = vpop.f32.mrf.mxu0
        %v1861 = vadd.f32 %v1692, %v1860
        %1862 = vmatmul.bf16.gmra.mxu0 %v1054
        %v1863 = vpop.f32.mrf.mxu0
        %v1864 = vadd.f32 %v1695, %v1863
        %v1865 = vpop.f32.mrf.mxu0
        %v1866 = vadd.f32 %v1697, %v1865
        %1867 = vmatmul.bf16.gmra.mxu0 %v1058
        %v1868 = vpop.f32.mrf.mxu0
        %v1869 = vadd.f32 %v1700, %v1868
        %v1870 = vpop.f32.mrf.mxu0
        %v1871 = vadd.f32 %v1702, %v1870
        %1872 = vmatmul.bf16.gmra.mxu0 %v1062
        %v1873 = vpop.f32.mrf.mxu0
        %v1874 = vadd.f32 %v1705, %v1873
        %v1875 = vpop.f32.mrf.mxu0
        %v1876 = vadd.f32 %v1707, %v1875
        %1877 = vmatmul.bf16.gmra.mxu0 %v1066
        %v1878 = vpop.f32.mrf.mxu0
        %v1879 = vadd.f32 %v1710, %v1878
        %v1880 = vpop.f32.mrf.mxu0
        %v1881 = vadd.f32 %v1712, %v1880
        %1882 = vmatmul.bf16.gmra.mxu0 %v1070
        %v1883 = vpop.f32.mrf.mxu0
        %v1884 = vadd.f32 %v1715, %v1883
        %v1885 = vpop.f32.mrf.mxu0
        %v1886 = vadd.f32 %v1717, %v1885
        %1887 = vmatmul.bf16.gmra.mxu0 %v1074
        %v1888 = vpop.f32.mrf.mxu0
        %v1889 = vadd.f32 %v1720, %v1888
        %v1890 = vpop.f32.mrf.mxu0
        %v1891 = vadd.f32 %v1722, %v1890
        %1892 = vmatmul.bf16.gmra.mxu0 %v1078
        %v1893 = vpop.f32.mrf.mxu0
        %v1894 = vadd.f32 %v1725, %v1893
        %v1895 = vpop.f32.mrf.mxu0
        %v1896 = vadd.f32 %v1727, %v1895
        %1897 = vmatmul.bf16.gmra.mxu0 %v1082
        %v1898 = vpop.f32.mrf.mxu0
        %v1899 = vadd.f32 %v1730, %v1898
        %v1900 = vpop.f32.mrf.mxu0
        %v1901 = vadd.f32 %v1732, %v1900
        %1902 = vmatmul.bf16.gmra.mxu0 %v1086
        %v1903 = vpop.f32.mrf.mxu0
        %v1904 = vadd.f32 %v1735, %v1903
        %v1905 = vpop.f32.mrf.mxu0
        %v1906 = vadd.f32 %v1737, %v1905
        %1907 = vmatmul.bf16.gmra.mxu0 %v1090
        %v1908 = vpop.f32.mrf.mxu0
        %v1909 = vadd.f32 %v1740, %v1908
        %v1910 = vpop.f32.mrf.mxu0
        %v1911 = vadd.f32 %v1742, %v1910
        %1912 = vmatmul.bf16.gmra.mxu0 %v1094
        %v1913 = vpop.f32.mrf.mxu0
        %v1914 = vadd.f32 %v1745, %v1913
        %v1915 = vpop.f32.mrf.mxu0
        %v1916 = vadd.f32 %v1747, %v1915
        %1917 = vmatmul.bf16.gmra.mxu0 %v1098
        %v1918 = vpop.f32.mrf.mxu0
        %v1919 = vadd.f32 %v1750, %v1918
        %v1920 = vpop.f32.mrf.mxu0
        %v1921 = vadd.f32 %v1752, %v1920
        %1922 = vmatmul.bf16.gmra.mxu0 %v1102
        %v1923 = vpop.f32.mrf.mxu0
        %v1924 = vadd.f32 %v1755, %v1923
        %v1925 = vpop.f32.mrf.mxu0
        %v1926 = vadd.f32 %v1757, %v1925
        %1927 = vmatmul.bf16.gmra.mxu0 %v1106
        %v1928 = vpop.f32.mrf.mxu0
        %v1929 = vadd.f32 %v1760, %v1928
        %v1930 = vpop.f32.mrf.mxu0
        %v1931 = vadd.f32 %v1762, %v1930
        %1932 = vmatmul.bf16.gmra.mxu0 %v1110
        %v1933 = vpop.f32.mrf.mxu0
        %v1934 = vadd.f32 %v1765, %v1933
        %v1935 = vpop.f32.mrf.mxu0
        %v1936 = vadd.f32 %v1767, %v1935
        %1937 = vmatmul.bf16.gmra.mxu0 %v1114
        %v1938 = vpop.f32.mrf.mxu0
        %v1939 = vadd.f32 %v1770, %v1938
        %v1940 = vpop.f32.mrf.mxu0
        %v1941 = vadd.f32 %v1772, %v1940
        %1942 = vdwg.mxu0
        %1943 = vmatpush.bf16.msra.mxu0 %v1403
        %1944 = vmatpush.bf16.msra.mxu0 %v1402
        %1945 = vmatpush.bf16.msra.mxu0 %v1401
        %1946 = vmatpush.bf16.msra.mxu0 %v1400
        %1947 = vmatpush.bf16.msra.mxu0 %v1399
        %1948 = vmatpush.bf16.msra.mxu0 %v1398
        %1949 = vmatpush.bf16.msra.mxu0 %v1397
        %1950 = vmatpush.bf16.msra.mxu0 %v1396
        %1951 = vmatmul.bf16.gmra.mxu0 %v991
        %v1952 = vpop.f32.mrf.mxu0
        %v1953 = vadd.f32 %v1784, %v1952
        %v1954 = vpop.f32.mrf.mxu0
        %v1955 = vadd.f32 %v1786, %v1954
        %1956 = vmatmul.bf16.gmra.mxu0 %v995
        %v1957 = vpop.f32.mrf.mxu0
        %v1958 = vadd.f32 %v1789, %v1957
        %v1959 = vpop.f32.mrf.mxu0
        %v1960 = vadd.f32 %v1791, %v1959
        %1961 = vmatmul.bf16.gmra.mxu0 %v999
        %v1962 = vpop.f32.mrf.mxu0
        %v1963 = vadd.f32 %v1794, %v1962
        %v1964 = vpop.f32.mrf.mxu0
        %v1965 = vadd.f32 %v1796, %v1964
        %1966 = vmatmul.bf16.gmra.mxu0 %v1003
        %v1967 = vpop.f32.mrf.mxu0
        %v1968 = vadd.f32 %v1799, %v1967
        %v1969 = vpop.f32.mrf.mxu0
        %v1970 = vadd.f32 %v1801, %v1969
        %1971 = vmatmul.bf16.gmra.mxu0 %v1007
        %v1972 = vpop.f32.mrf.mxu0
        %v1973 = vadd.f32 %v1804, %v1972
        %v1974 = vpop.f32.mrf.mxu0
        %v1975 = vadd.f32 %v1806, %v1974
        %1976 = vmatmul.bf16.gmra.mxu0 %v1011
        %v1977 = vpop.f32.mrf.mxu0
        %v1978 = vadd.f32 %v1809, %v1977
        %v1979 = vpop.f32.mrf.mxu0
        %v1980 = vadd.f32 %v1811, %v1979
        %1981 = vmatmul.bf16.gmra.mxu0 %v1015
        %v1982 = vpop.f32.mrf.mxu0
        %v1983 = vadd.f32 %v1814, %v1982
        %v1984 = vpop.f32.mrf.mxu0
        %v1985 = vadd.f32 %v1816, %v1984
        %1986 = vmatmul.bf16.gmra.mxu0 %v1019
        %v1987 = vpop.f32.mrf.mxu0
        %v1988 = vadd.f32 %v1819, %v1987
        %v1989 = vpop.f32.mrf.mxu0
        %v1990 = vadd.f32 %v1821, %v1989
        %1991 = vmatmul.bf16.gmra.mxu0 %v1023
        %v1992 = vpop.f32.mrf.mxu0
        %v1993 = vadd.f32 %v1824, %v1992
        %v1994 = vpop.f32.mrf.mxu0
        %v1995 = vadd.f32 %v1826, %v1994
        %1996 = vmatmul.bf16.gmra.mxu0 %v1027
        %v1997 = vpop.f32.mrf.mxu0
        %v1998 = vadd.f32 %v1829, %v1997
        %v1999 = vpop.f32.mrf.mxu0
        %v2000 = vadd.f32 %v1831, %v1999
        %2001 = vmatmul.bf16.gmra.mxu0 %v1031
        %v2002 = vpop.f32.mrf.mxu0
        %v2003 = vadd.f32 %v1834, %v2002
        %v2004 = vpop.f32.mrf.mxu0
        %v2005 = vadd.f32 %v1836, %v2004
        %2006 = vmatmul.bf16.gmra.mxu0 %v1035
        %v2007 = vpop.f32.mrf.mxu0
        %v2008 = vadd.f32 %v1839, %v2007
        %v2009 = vpop.f32.mrf.mxu0
        %v2010 = vadd.f32 %v1841, %v2009
        %2011 = vmatmul.bf16.gmra.mxu0 %v1039
        %v2012 = vpop.f32.mrf.mxu0
        %v2013 = vadd.f32 %v1844, %v2012
        %v2014 = vpop.f32.mrf.mxu0
        %v2015 = vadd.f32 %v1846, %v2014
        %2016 = vmatmul.bf16.gmra.mxu0 %v1043
        %v2017 = vpop.f32.mrf.mxu0
        %v2018 = vadd.f32 %v1849, %v2017
        %v2019 = vpop.f32.mrf.mxu0
        %v2020 = vadd.f32 %v1851, %v2019
        %2021 = vmatmul.bf16.gmra.mxu0 %v1047
        %v2022 = vpop.f32.mrf.mxu0
        %v2023 = vadd.f32 %v1854, %v2022
        %v2024 = vpop.f32.mrf.mxu0
        %v2025 = vadd.f32 %v1856, %v2024
        %2026 = vmatmul.bf16.gmra.mxu0 %v1051
        %v2027 = vpop.f32.mrf.mxu0
        %v2028 = vadd.f32 %v1859, %v2027
        %v2029 = vpop.f32.mrf.mxu0
        %v2030 = vadd.f32 %v1861, %v2029
        %2031 = vmatmul.bf16.gmra.mxu0 %v1055
        %v2032 = vpop.f32.mrf.mxu0
        %v2033 = vadd.f32 %v1864, %v2032
        %v2034 = vpop.f32.mrf.mxu0
        %v2035 = vadd.f32 %v1866, %v2034
        %2036 = vmatmul.bf16.gmra.mxu0 %v1059
        %v2037 = vpop.f32.mrf.mxu0
        %v2038 = vadd.f32 %v1869, %v2037
        %v2039 = vpop.f32.mrf.mxu0
        %v2040 = vadd.f32 %v1871, %v2039
        %2041 = vmatmul.bf16.gmra.mxu0 %v1063
        %v2042 = vpop.f32.mrf.mxu0
        %v2043 = vadd.f32 %v1874, %v2042
        %v2044 = vpop.f32.mrf.mxu0
        %v2045 = vadd.f32 %v1876, %v2044
        %2046 = vmatmul.bf16.gmra.mxu0 %v1067
        %v2047 = vpop.f32.mrf.mxu0
        %v2048 = vadd.f32 %v1879, %v2047
        %v2049 = vpop.f32.mrf.mxu0
        %v2050 = vadd.f32 %v1881, %v2049
        %2051 = vmatmul.bf16.gmra.mxu0 %v1071
        %v2052 = vpop.f32.mrf.mxu0
        %v2053 = vadd.f32 %v1884, %v2052
        %v2054 = vpop.f32.mrf.mxu0
        %v2055 = vadd.f32 %v1886, %v2054
        %2056 = vmatmul.bf16.gmra.mxu0 %v1075
        %v2057 = vpop.f32.mrf.mxu0
        %v2058 = vadd.f32 %v1889, %v2057
        %v2059 = vpop.f32.mrf.mxu0
        %v2060 = vadd.f32 %v1891, %v2059
        %2061 = vmatmul.bf16.gmra.mxu0 %v1079
        %v2062 = vpop.f32.mrf.mxu0
        %v2063 = vadd.f32 %v1894, %v2062
        %v2064 = vpop.f32.mrf.mxu0
        %v2065 = vadd.f32 %v1896, %v2064
        %2066 = vmatmul.bf16.gmra.mxu0 %v1083
        %v2067 = vpop.f32.mrf.mxu0
        %v2068 = vadd.f32 %v1899, %v2067
        %v2069 = vpop.f32.mrf.mxu0
        %v2070 = vadd.f32 %v1901, %v2069
        %2071 = vmatmul.bf16.gmra.mxu0 %v1087
        %v2072 = vpop.f32.mrf.mxu0
        %v2073 = vadd.f32 %v1904, %v2072
        %v2074 = vpop.f32.mrf.mxu0
        %v2075 = vadd.f32 %v1906, %v2074
        %2076 = vmatmul.bf16.gmra.mxu0 %v1091
        %v2077 = vpop.f32.mrf.mxu0
        %v2078 = vadd.f32 %v1909, %v2077
        %v2079 = vpop.f32.mrf.mxu0
        %v2080 = vadd.f32 %v1911, %v2079
        %2081 = vmatmul.bf16.gmra.mxu0 %v1095
        %v2082 = vpop.f32.mrf.mxu0
        %v2083 = vadd.f32 %v1914, %v2082
        %v2084 = vpop.f32.mrf.mxu0
        %v2085 = vadd.f32 %v1916, %v2084
        %2086 = vmatmul.bf16.gmra.mxu0 %v1099
        %v2087 = vpop.f32.mrf.mxu0
        %v2088 = vadd.f32 %v1919, %v2087
        %v2089 = vpop.f32.mrf.mxu0
        %v2090 = vadd.f32 %v1921, %v2089
        %2091 = vmatmul.bf16.gmra.mxu0 %v1103
        %v2092 = vpop.f32.mrf.mxu0
        %v2093 = vadd.f32 %v1924, %v2092
        %v2094 = vpop.f32.mrf.mxu0
        %v2095 = vadd.f32 %v1926, %v2094
        %2096 = vmatmul.bf16.gmra.mxu0 %v1107
        %v2097 = vpop.f32.mrf.mxu0
        %v2098 = vadd.f32 %v1929, %v2097
        %v2099 = vpop.f32.mrf.mxu0
        %v2100 = vadd.f32 %v1931, %v2099
        %2101 = vmatmul.bf16.gmra.mxu0 %v1111
        %v2102 = vpop.f32.mrf.mxu0
        %v2103 = vadd.f32 %v1934, %v2102
        %v2104 = vpop.f32.mrf.mxu0
        %v2105 = vadd.f32 %v1936, %v2104
        %2106 = vmatmul.bf16.gmra.mxu0 %v1115
        %v2107 = vpop.f32.mrf.mxu0
        %v2108 = vadd.f32 %v1939, %v2107
        %v2109 = vpop.f32.mrf.mxu0
        %v2110 = vadd.f32 %v1941, %v2109
        %2111 = vdwg.mxu0
        %v2112 = vadd.f32 %v348, %v1953
        %v2113 = vadd.f32 %v349, %v1955
        %v2114 = vadd.f32 %v350, %v1958
        %v2115 = vadd.f32 %v351, %v1960
        %v2116 = vadd.f32 %v352, %v1963
        %v2117 = vadd.f32 %v353, %v1965
        %v2118 = vadd.f32 %v354, %v1968
        %v2119 = vadd.f32 %v355, %v1970
        %v2120 = vadd.f32 %v356, %v1973
        %v2121 = vadd.f32 %v357, %v1975
        %v2122 = vadd.f32 %v358, %v1978
        %v2123 = vadd.f32 %v359, %v1980
        %v2124 = vadd.f32 %v360, %v1983
        %v2125 = vadd.f32 %v361, %v1985
        %v2126 = vadd.f32 %v362, %v1988
        %v2127 = vadd.f32 %v363, %v1990
        %v2128 = vadd.f32 %v364, %v1993
        %v2129 = vadd.f32 %v365, %v1995
        %v2130 = vadd.f32 %v366, %v1998
        %v2131 = vadd.f32 %v367, %v2000
        %v2132 = vadd.f32 %v368, %v2003
        %v2133 = vadd.f32 %v369, %v2005
        %v2134 = vadd.f32 %v370, %v2008
        %v2135 = vadd.f32 %v371, %v2010
        %v2136 = vadd.f32 %v372, %v2013
        %v2137 = vadd.f32 %v373, %v2015
        %v2138 = vadd.f32 %v374, %v2018
        %v2139 = vadd.f32 %v375, %v2020
        %v2140 = vadd.f32 %v376, %v2023
        %v2141 = vadd.f32 %v377, %v2025
        %v2142 = vadd.f32 %v378, %v2028
        %v2143 = vadd.f32 %v379, %v2030
        %v2144 = vadd.f32 %v380, %v2033
        %v2145 = vadd.f32 %v381, %v2035
        %v2146 = vadd.f32 %v382, %v2038
        %v2147 = vadd.f32 %v383, %v2040
        %v2148 = vadd.f32 %v384, %v2043
        %v2149 = vadd.f32 %v385, %v2045
        %v2150 = vadd.f32 %v386, %v2048
        %v2151 = vadd.f32 %v387, %v2050
        %v2152 = vadd.f32 %v388, %v2053
        %v2153 = vadd.f32 %v389, %v2055
        %v2154 = vadd.f32 %v390, %v2058
        %v2155 = vadd.f32 %v391, %v2060
        %v2156 = vadd.f32 %v392, %v2063
        %v2157 = vadd.f32 %v393, %v2065
        %v2158 = vadd.f32 %v394, %v2068
        %v2159 = vadd.f32 %v395, %v2070
        %v2160 = vadd.f32 %v396, %v2073
        %v2161 = vadd.f32 %v397, %v2075
        %v2162 = vadd.f32 %v398, %v2078
        %v2163 = vadd.f32 %v399, %v2080
        %v2164 = vadd.f32 %v400, %v2083
        %v2165 = vadd.f32 %v401, %v2085
        %v2166 = vadd.f32 %v402, %v2088
        %v2167 = vadd.f32 %v403, %v2090
        %v2168 = vadd.f32 %v404, %v2093
        %v2169 = vadd.f32 %v405, %v2095
        %v2170 = vadd.f32 %v406, %v2098
        %v2171 = vadd.f32 %v407, %v2100
        %v2172 = vadd.f32 %v408, %v2103
        %v2173 = vadd.f32 %v409, %v2105
        %v2174 = vadd.f32 %v410, %v2108
        %v2175 = vadd.f32 %v411, %v2110
        %2176 = vst [vmem:[#allocation2] sm:$0xff] %v2112
        %2177 = vst [vmem:[#allocation2 + $0x8] sm:$0xff] %v2113
        %2178 = vst [vmem:[#allocation2 + $0x10] sm:$0xff] %v2114
        %2179 = vst [vmem:[#allocation2 + $0x18] sm:$0xff] %v2115
        %2180 = vst [vmem:[#allocation2 + $0x20] sm:$0xff] %v2116
        %2181 = vst [vmem:[#allocation2 + $0x28] sm:$0xff] %v2117
        %2182 = vst [vmem:[#allocation2 + $0x30] sm:$0xff] %v2118
        %2183 = vst [vmem:[#allocation2 + $0x38] sm:$0xff] %v2119
        %2184 = vst [vmem:[#allocation2 + $0x40] sm:$0xff] %v2120
        %2185 = vst [vmem:[#allocation2 + $0x48] sm:$0xff] %v2121
        %2186 = vst [vmem:[#allocation2 + $0x50] sm:$0xff] %v2122
        %2187 = vst [vmem:[#allocation2 + $0x58] sm:$0xff] %v2123
        %2188 = vst [vmem:[#allocation2 + $0x60] sm:$0xff] %v2124
        %2189 = vst [vmem:[#allocation2 + $0x68] sm:$0xff] %v2125
        %2190 = vst [vmem:[#allocation2 + $0x70] sm:$0xff] %v2126
        %2191 = vst [vmem:[#allocation2 + $0x78] sm:$0xff] %v2127
        %2192 = vst [vmem:[#allocation2 + $0x80] sm:$0xff] %v2128
        %2193 = vst [vmem:[#allocation2 + $0x88] sm:$0xff] %v2129
        %2194 = vst [vmem:[#allocation2 + $0x90] sm:$0xff] %v2130
        %2195 = vst [vmem:[#allocation2 + $0x98] sm:$0xff] %v2131
        %2196 = vst [vmem:[#allocation2 + $0xa0] sm:$0xff] %v2132
        %2197 = vst [vmem:[#allocation2 + $0xa8] sm:$0xff] %v2133
        %2198 = vst [vmem:[#allocation2 + $0xb0] sm:$0xff] %v2134
        %2199 = vst [vmem:[#allocation2 + $0xb8] sm:$0xff] %v2135
        %2200 = vst [vmem:[#allocation2 + $0xc0] sm:$0xff] %v2136
        %2201 = vst [vmem:[#allocation2 + $0xc8] sm:$0xff] %v2137
        %2202 = vst [vmem:[#allocation2 + $0xd0] sm:$0xff] %v2138
        %2203 = vst [vmem:[#allocation2 + $0xd8] sm:$0xff] %v2139
        %2204 = vst [vmem:[#allocation2 + $0xe0] sm:$0xff] %v2140
        %2205 = vst [vmem:[#allocation2 + $0xe8] sm:$0xff] %v2141
        %2206 = vst [vmem:[#allocation2 + $0xf0] sm:$0xff] %v2142
        %2207 = vst [vmem:[#allocation2 + $0xf8] sm:$0xff] %v2143
        %2208 = vst [vmem:[#allocation2 + $0x100] sm:$0xff] %v2144
        %2209 = vst [vmem:[#allocation2 + $0x108] sm:$0xff] %v2145
        %2210 = vst [vmem:[#allocation2 + $0x110] sm:$0xff] %v2146
        %2211 = vst [vmem:[#allocation2 + $0x118] sm:$0xff] %v2147
        %2212 = vst [vmem:[#allocation2 + $0x120] sm:$0xff] %v2148
        %2213 = vst [vmem:[#allocation2 + $0x128] sm:$0xff] %v2149
        %2214 = vst [vmem:[#allocation2 + $0x130] sm:$0xff] %v2150
        %2215 = vst [vmem:[#allocation2 + $0x138] sm:$0xff] %v2151
        %2216 = vst [vmem:[#allocation2 + $0x140] sm:$0xff] %v2152
        %2217 = vst [vmem:[#allocation2 + $0x148] sm:$0xff] %v2153
        %2218 = vst [vmem:[#allocation2 + $0x150] sm:$0xff] %v2154
        %2219 = vst [vmem:[#allocation2 + $0x158] sm:$0xff] %v2155
        %2220 = vst [vmem:[#allocation2 + $0x160] sm:$0xff] %v2156
        %2221 = vst [vmem:[#allocation2 + $0x168] sm:$0xff] %v2157
        %2222 = vst [vmem:[#allocation2 + $0x170] sm:$0xff] %v2158
        %2223 = vst [vmem:[#allocation2 + $0x178] sm:$0xff] %v2159
        %2224 = vst [vmem:[#allocation2 + $0x180] sm:$0xff] %v2160
        %2225 = vst [vmem:[#allocation2 + $0x188] sm:$0xff] %v2161
        %2226 = vst [vmem:[#allocation2 + $0x190] sm:$0xff] %v2162
        %2227 = vst [vmem:[#allocation2 + $0x198] sm:$0xff] %v2163
        %2228 = vst [vmem:[#allocation2 + $0x1a0] sm:$0xff] %v2164
        %2229 = vst [vmem:[#allocation2 + $0x1a8] sm:$0xff] %v2165
        %2230 = vst [vmem:[#allocation2 + $0x1b0] sm:$0xff] %v2166
        %2231 = vst [vmem:[#allocation2 + $0x1b8] sm:$0xff] %v2167
        %2232 = vst [vmem:[#allocation2 + $0x1c0] sm:$0xff] %v2168
        %2233 = vst [vmem:[#allocation2 + $0x1c8] sm:$0xff] %v2169
        %2234 = vst [vmem:[#allocation2 + $0x1d0] sm:$0xff] %v2170
        %2235 = vst [vmem:[#allocation2 + $0x1d8] sm:$0xff] %v2171
        %2236 = vst [vmem:[#allocation2 + $0x1e0] sm:$0xff] %v2172
        %2237 = vst [vmem:[#allocation2 + $0x1e8] sm:$0xff] %v2173
        %2238 = vst [vmem:[#allocation2 + $0x1f0] sm:$0xff] %v2174
        %2239 = vst [vmem:[#allocation2 + $0x1f8] sm:$0xff] %v2175
        %p2240 = scmp.eq.s32.totalorder %s34, 1
        // Predicated region
        $region41: #{matmul_bn_stats.1} parent=27 // pred_check
          %p2241 = pneg %p2240
        $region42: #{matmul_bn_stats.1} parent=27 // pred_check_branch
          %2243 = sbr.rel (%p2241) target = $region44
        $region43: #{matmul_bn_stats.1} parent=27 // pred_region
          %v2244 = vld [vmem:[#allocation2] sm:$0xff]
          %v2245 = vld [vmem:[#allocation2 + $0x8] sm:$0xff]
          %v2246 = vld [vmem:[#allocation2 + $0x10] sm:$0xff]
          %v2247 = vld [vmem:[#allocation2 + $0x18] sm:$0xff]
          %v2248 = vld [vmem:[#allocation2 + $0x20] sm:$0xff]
          %v2249 = vld [vmem:[#allocation2 + $0x28] sm:$0xff]
          %v2250 = vld [vmem:[#allocation2 + $0x30] sm:$0xff]
          %v2251 = vld [vmem:[#allocation2 + $0x38] sm:$0xff]
          %v2252 = vld [vmem:[#allocation2 + $0x40] sm:$0xff]
          %v2253 = vld [vmem:[#allocation2 + $0x48] sm:$0xff]
          %v2254 = vld [vmem:[#allocation2 + $0x50] sm:$0xff]
          %v2255 = vld [vmem:[#allocation2 + $0x58] sm:$0xff]
          %v2256 = vld [vmem:[#allocation2 + $0x60] sm:$0xff]
          %v2257 = vld [vmem:[#allocation2 + $0x68] sm:$0xff]
          %v2258 = vld [vmem:[#allocation2 + $0x70] sm:$0xff]
          %v2259 = vld [vmem:[#allocation2 + $0x78] sm:$0xff]
          %v2260 = vld [vmem:[#allocation2 + $0x80] sm:$0xff]
          %v2261 = vld [vmem:[#allocation2 + $0x88] sm:$0xff]
          %v2262 = vld [vmem:[#allocation2 + $0x90] sm:$0xff]
          %v2263 = vld [vmem:[#allocation2 + $0x98] sm:$0xff]
          %v2264 = vld [vmem:[#allocation2 + $0xa0] sm:$0xff]
          %v2265 = vld [vmem:[#allocation2 + $0xa8] sm:$0xff]
          %v2266 = vld [vmem:[#allocation2 + $0xb0] sm:$0xff]
          %v2267 = vld [vmem:[#allocation2 + $0xb8] sm:$0xff]
          %v2268 = vld [vmem:[#allocation2 + $0xc0] sm:$0xff]
          %v2269 = vld [vmem:[#allocation2 + $0xc8] sm:$0xff]
          %v2270 = vld [vmem:[#allocation2 + $0xd0] sm:$0xff]
          %v2271 = vld [vmem:[#allocation2 + $0xd8] sm:$0xff]
          %v2272 = vld [vmem:[#allocation2 + $0xe0] sm:$0xff]
          %v2273 = vld [vmem:[#allocation2 + $0xe8] sm:$0xff]
          %v2274 = vld [vmem:[#allocation2 + $0xf0] sm:$0xff]
          %v2275 = vld [vmem:[#allocation2 + $0xf8] sm:$0xff]
          %v2276 = vld [vmem:[#allocation2 + $0x100] sm:$0xff]
          %v2277 = vld [vmem:[#allocation2 + $0x108] sm:$0xff]
          %v2278 = vld [vmem:[#allocation2 + $0x110] sm:$0xff]
          %v2279 = vld [vmem:[#allocation2 + $0x118] sm:$0xff]
          %v2280 = vld [vmem:[#allocation2 + $0x120] sm:$0xff]
          %v2281 = vld [vmem:[#allocation2 + $0x128] sm:$0xff]
          %v2282 = vld [vmem:[#allocation2 + $0x130] sm:$0xff]
          %v2283 = vld [vmem:[#allocation2 + $0x138] sm:$0xff]
          %v2284 = vld [vmem:[#allocation2 + $0x140] sm:$0xff]
          %v2285 = vld [vmem:[#allocation2 + $0x148] sm:$0xff]
          %v2286 = vld [vmem:[#allocation2 + $0x150] sm:$0xff]
          %v2287 = vld [vmem:[#allocation2 + $0x158] sm:$0xff]
          %v2288 = vld [vmem:[#allocation2 + $0x160] sm:$0xff]
          %v2289 = vld [vmem:[#allocation2 + $0x168] sm:$0xff]
          %v2290 = vld [vmem:[#allocation2 + $0x170] sm:$0xff]
          %v2291 = vld [vmem:[#allocation2 + $0x178] sm:$0xff]
          %v2292 = vld [vmem:[#allocation2 + $0x180] sm:$0xff]
          %v2293 = vld [vmem:[#allocation2 + $0x188] sm:$0xff]
          %v2294 = vld [vmem:[#allocation2 + $0x190] sm:$0xff]
          %v2295 = vld [vmem:[#allocation2 + $0x198] sm:$0xff]
          %v2296 = vld [vmem:[#allocation2 + $0x1a0] sm:$0xff]
          %v2297 = vld [vmem:[#allocation2 + $0x1a8] sm:$0xff]
          %v2298 = vld [vmem:[#allocation2 + $0x1b0] sm:$0xff]
          %v2299 = vld [vmem:[#allocation2 + $0x1b8] sm:$0xff]
          %v2300 = vld [vmem:[#allocation2 + $0x1c0] sm:$0xff]
          %v2301 = vld [vmem:[#allocation2 + $0x1c8] sm:$0xff]
          %v2302 = vld [vmem:[#allocation2 + $0x1d0] sm:$0xff]
          %v2303 = vld [vmem:[#allocation2 + $0x1d8] sm:$0xff]
          %v2304 = vld [vmem:[#allocation2 + $0x1e0] sm:$0xff]
          %v2305 = vld [vmem:[#allocation2 + $0x1e8] sm:$0xff]
          %v2306 = vld [vmem:[#allocation2 + $0x1f0] sm:$0xff]
          %v2307 = vld [vmem:[#allocation2 + $0x1f8] sm:$0xff]
          %v2308 = vpack.c.bf16 %v2244, %v2244
          %v2309 = vpack.c.bf16 %v2245, %v2245
          %v2310 = vpack.c.bf16 %v2246, %v2246
          %v2311 = vpack.c.bf16 %v2247, %v2247
          %v2312 = vpack.c.bf16 %v2248, %v2248
          %v2313 = vpack.c.bf16 %v2249, %v2249
          %v2314 = vpack.c.bf16 %v2250, %v2250
          %v2315 = vpack.c.bf16 %v2251, %v2251
          %v2316 = vpack.c.bf16 %v2252, %v2252
          %v2317 = vpack.c.bf16 %v2253, %v2253
          %v2318 = vpack.c.bf16 %v2254, %v2254
          %v2319 = vpack.c.bf16 %v2255, %v2255
          %v2320 = vpack.c.bf16 %v2256, %v2256
          %v2321 = vpack.c.bf16 %v2257, %v2257
          %v2322 = vpack.c.bf16 %v2258, %v2258
          %v2323 = vpack.c.bf16 %v2259, %v2259
          %v2324 = vpack.c.bf16 %v2260, %v2260
          %v2325 = vpack.c.bf16 %v2261, %v2261
          %v2326 = vpack.c.bf16 %v2262, %v2262
          %v2327 = vpack.c.bf16 %v2263, %v2263
          %v2328 = vpack.c.bf16 %v2264, %v2264
          %v2329 = vpack.c.bf16 %v2265, %v2265
          %v2330 = vpack.c.bf16 %v2266, %v2266
          %v2331 = vpack.c.bf16 %v2267, %v2267
          %v2332 = vpack.c.bf16 %v2268, %v2268
          %v2333 = vpack.c.bf16 %v2269, %v2269
          %v2334 = vpack.c.bf16 %v2270, %v2270
          %v2335 = vpack.c.bf16 %v2271, %v2271
          %v2336 = vpack.c.bf16 %v2272, %v2272
          %v2337 = vpack.c.bf16 %v2273, %v2273
          %v2338 = vpack.c.bf16 %v2274, %v2274
          %v2339 = vpack.c.bf16 %v2275, %v2275
          %v2340 = vpack.c.bf16 %v2276, %v2276
          %v2341 = vpack.c.bf16 %v2277, %v2277
          %v2342 = vpack.c.bf16 %v2278, %v2278
          %v2343 = vpack.c.bf16 %v2279, %v2279
          %v2344 = vpack.c.bf16 %v2280, %v2280
          %v2345 = vpack.c.bf16 %v2281, %v2281
          %v2346 = vpack.c.bf16 %v2282, %v2282
          %v2347 = vpack.c.bf16 %v2283, %v2283
          %v2348 = vpack.c.bf16 %v2284, %v2284
          %v2349 = vpack.c.bf16 %v2285, %v2285
          %v2350 = vpack.c.bf16 %v2286, %v2286
          %v2351 = vpack.c.bf16 %v2287, %v2287
          %v2352 = vpack.c.bf16 %v2288, %v2288
          %v2353 = vpack.c.bf16 %v2289, %v2289
          %v2354 = vpack.c.bf16 %v2290, %v2290
          %v2355 = vpack.c.bf16 %v2291, %v2291
          %v2356 = vpack.c.bf16 %v2292, %v2292
          %v2357 = vpack.c.bf16 %v2293, %v2293
          %v2358 = vpack.c.bf16 %v2294, %v2294
          %v2359 = vpack.c.bf16 %v2295, %v2295
          %v2360 = vpack.c.bf16 %v2296, %v2296
          %v2361 = vpack.c.bf16 %v2297, %v2297
          %v2362 = vpack.c.bf16 %v2298, %v2298
          %v2363 = vpack.c.bf16 %v2299, %v2299
          %v2364 = vpack.c.bf16 %v2300, %v2300
          %v2365 = vpack.c.bf16 %v2301, %v2301
          %v2366 = vpack.c.bf16 %v2302, %v2302
          %v2367 = vpack.c.bf16 %v2303, %v2303
          %v2368 = vpack.c.bf16 %v2304, %v2304
          %v2369 = vpack.c.bf16 %v2305, %v2305
          %v2370 = vpack.c.bf16 %v2306, %v2306
          %v2371 = vpack.c.bf16 %v2307, %v2307
          %2372 = vst [vmem:[%s268] sm:$0xf] %v2308
          %2373 = vst [vmem:[%s268 + $0x4] sm:$0xf] %v2309
          %2374 = vst [vmem:[%s268 + $0x8] sm:$0xf] %v2310
          %2375 = vst [vmem:[%s268 + $0xc] sm:$0xf] %v2311
          %2376 = vst [vmem:[%s268 + $0x10] sm:$0xf] %v2312
          %2377 = vst [vmem:[%s268 + $0x14] sm:$0xf] %v2313
          %2378 = vst [vmem:[%s268 + $0x18] sm:$0xf] %v2314
          %2379 = vst [vmem:[%s268 + $0x1c] sm:$0xf] %v2315
          %2380 = vst [vmem:[%s268 + $0x20] sm:$0xf] %v2316
          %2381 = vst [vmem:[%s268 + $0x24] sm:$0xf] %v2317
          %2382 = vst [vmem:[%s268 + $0x28] sm:$0xf] %v2318
          %2383 = vst [vmem:[%s268 + $0x2c] sm:$0xf] %v2319
          %2384 = vst [vmem:[%s268 + $0x30] sm:$0xf] %v2320
          %2385 = vst [vmem:[%s268 + $0x34] sm:$0xf] %v2321
          %2386 = vst [vmem:[%s268 + $0x38] sm:$0xf] %v2322
          %2387 = vst [vmem:[%s268 + $0x3c] sm:$0xf] %v2323
          %2388 = vst [vmem:[%s268 + $0x40] sm:$0xf] %v2324
          %2389 = vst [vmem:[%s268 + $0x44] sm:$0xf] %v2325
          %2390 = vst [vmem:[%s268 + $0x48] sm:$0xf] %v2326
          %2391 = vst [vmem:[%s268 + $0x4c] sm:$0xf] %v2327
          %2392 = vst [vmem:[%s268 + $0x50] sm:$0xf] %v2328
          %2393 = vst [vmem:[%s268 + $0x54] sm:$0xf] %v2329
          %2394 = vst [vmem:[%s268 + $0x58] sm:$0xf] %v2330
          %2395 = vst [vmem:[%s268 + $0x5c] sm:$0xf] %v2331
          %2396 = vst [vmem:[%s268 + $0x60] sm:$0xf] %v2332
          %2397 = vst [vmem:[%s268 + $0x64] sm:$0xf] %v2333
          %2398 = vst [vmem:[%s268 + $0x68] sm:$0xf] %v2334
          %2399 = vst [vmem:[%s268 + $0x6c] sm:$0xf] %v2335
          %2400 = vst [vmem:[%s268 + $0x70] sm:$0xf] %v2336
          %2401 = vst [vmem:[%s268 + $0x74] sm:$0xf] %v2337
          %2402 = vst [vmem:[%s268 + $0x78] sm:$0xf] %v2338
          %2403 = vst [vmem:[%s268 + $0x7c] sm:$0xf] %v2339
          %2404 = vst [vmem:[%s268 + $0x80] sm:$0xf] %v2340
          %2405 = vst [vmem:[%s268 + $0x84] sm:$0xf] %v2341
          %2406 = vst [vmem:[%s268 + $0x88] sm:$0xf] %v2342
          %2407 = vst [vmem:[%s268 + $0x8c] sm:$0xf] %v2343
          %2408 = vst [vmem:[%s268 + $0x90] sm:$0xf] %v2344
          %2409 = vst [vmem:[%s268 + $0x94] sm:$0xf] %v2345
          %2410 = vst [vmem:[%s268 + $0x98] sm:$0xf] %v2346
          %2411 = vst [vmem:[%s268 + $0x9c] sm:$0xf] %v2347
          %2412 = vst [vmem:[%s268 + $0xa0] sm:$0xf] %v2348
          %2413 = vst [vmem:[%s268 + $0xa4] sm:$0xf] %v2349
          %2414 = vst [vmem:[%s268 + $0xa8] sm:$0xf] %v2350
          %2415 = vst [vmem:[%s268 + $0xac] sm:$0xf] %v2351
          %2416 = vst [vmem:[%s268 + $0xb0] sm:$0xf] %v2352
          %2417 = vst [vmem:[%s268 + $0xb4] sm:$0xf] %v2353
          %2418 = vst [vmem:[%s268 + $0xb8] sm:$0xf] %v2354
          %2419 = vst [vmem:[%s268 + $0xbc] sm:$0xf] %v2355
          %2420 = vst [vmem:[%s268 + $0xc0] sm:$0xf] %v2356
          %2421 = vst [vmem:[%s268 + $0xc4] sm:$0xf] %v2357
          %2422 = vst [vmem:[%s268 + $0xc8] sm:$0xf] %v2358
          %2423 = vst [vmem:[%s268 + $0xcc] sm:$0xf] %v2359
          %2424 = vst [vmem:[%s268 + $0xd0] sm:$0xf] %v2360
          %2425 = vst [vmem:[%s268 + $0xd4] sm:$0xf] %v2361
          %2426 = vst [vmem:[%s268 + $0xd8] sm:$0xf] %v2362
          %2427 = vst [vmem:[%s268 + $0xdc] sm:$0xf] %v2363
          %2428 = vst [vmem:[%s268 + $0xe0] sm:$0xf] %v2364
          %2429 = vst [vmem:[%s268 + $0xe4] sm:$0xf] %v2365
          %2430 = vst [vmem:[%s268 + $0xe8] sm:$0xf] %v2366
          %2431 = vst [vmem:[%s268 + $0xec] sm:$0xf] %v2367
          %2432 = vst [vmem:[%s268 + $0xf0] sm:$0xf] %v2368
          %2433 = vst [vmem:[%s268 + $0xf4] sm:$0xf] %v2369
          %2434 = vst [vmem:[%s268 + $0xf8] sm:$0xf] %v2370
          %2435 = vst [vmem:[%s268 + $0xfc] sm:$0xf] %v2371
          %v2436 = vadd.f32 %v2244, %v2245
          %v2437 = vadd.f32 %v2436, %v2246
          %v2438 = vadd.f32 %v2437, %v2247
          %v2439 = vadd.f32 %v2438, %v2248
          %v2440 = vadd.f32 %v2439, %v2249
          %v2441 = vadd.f32 %v2440, %v2250
          %v2442 = vadd.f32 %v2441, %v2251
          %v2443 = vadd.f32 %v2442, %v2252
          %v2444 = vadd.f32 %v2443, %v2253
          %v2445 = vadd.f32 %v2444, %v2254
          %v2446 = vadd.f32 %v2445, %v2255
          %v2447 = vadd.f32 %v2446, %v2256
          %v2448 = vadd.f32 %v2447, %v2257
          %v2449 = vadd.f32 %v2448, %v2258
          %v2450 = vadd.f32 %v2449, %v2259
          %v2451 = vadd.f32 %v2450, %v2260
          %v2452 = vadd.f32 %v2451, %v2261
          %v2453 = vadd.f32 %v2452, %v2262
          %v2454 = vadd.f32 %v2453, %v2263
          %v2455 = vadd.f32 %v2454, %v2264
          %v2456 = vadd.f32 %v2455, %v2265
          %v2457 = vadd.f32 %v2456, %v2266
          %v2458 = vadd.f32 %v2457, %v2267
          %v2459 = vadd.f32 %v2458, %v2268
          %v2460 = vadd.f32 %v2459, %v2269
          %v2461 = vadd.f32 %v2460, %v2270
          %v2462 = vadd.f32 %v2461, %v2271
          %v2463 = vadd.f32 %v2462, %v2272
          %v2464 = vadd.f32 %v2463, %v2273
          %v2465 = vadd.f32 %v2464, %v2274
          %v2466 = vadd.f32 %v2465, %v2275
          %v2467 = vadd.f32 %v2466, %v2276
          %v2468 = vadd.f32 %v2467, %v2277
          %v2469 = vadd.f32 %v2468, %v2278
          %v2470 = vadd.f32 %v2469, %v2279
          %v2471 = vadd.f32 %v2470, %v2280
          %v2472 = vadd.f32 %v2471, %v2281
          %v2473 = vadd.f32 %v2472, %v2282
          %v2474 = vadd.f32 %v2473, %v2283
          %v2475 = vadd.f32 %v2474, %v2284
          %v2476 = vadd.f32 %v2475, %v2285
          %v2477 = vadd.f32 %v2476, %v2286
          %v2478 = vadd.f32 %v2477, %v2287
          %v2479 = vadd.f32 %v2478, %v2288
          %v2480 = vadd.f32 %v2479, %v2289
          %v2481 = vadd.f32 %v2480, %v2290
          %v2482 = vadd.f32 %v2481, %v2291
          %v2483 = vadd.f32 %v2482, %v2292
          %v2484 = vadd.f32 %v2483, %v2293
          %v2485 = vadd.f32 %v2484, %v2294
          %v2486 = vadd.f32 %v2485, %v2295
          %v2487 = vadd.f32 %v2486, %v2296
          %v2488 = vadd.f32 %v2487, %v2297
          %v2489 = vadd.f32 %v2488, %v2298
          %v2490 = vadd.f32 %v2489, %v2299
          %v2491 = vadd.f32 %v2490, %v2300
          %v2492 = vadd.f32 %v2491, %v2301
          %v2493 = vadd.f32 %v2492, %v2302
          %v2494 = vadd.f32 %v2493, %v2303
          %v2495 = vadd.f32 %v2494, %v2304
          %v2496 = vadd.f32 %v2495, %v2305
          %v2497 = vadd.f32 %v2496, %v2306
          %v2498 = vadd.f32 %v2497, %v2307
          %v2499 = vrot.slane %v2498, 4
          %v2500 = vadd.f32 %v2498, %v2499
          %v2501 = vrot.slane %v2500, 2
          %v2502 = vadd.f32 %v2500, %v2501
          %v2503 = vrot.slane %v2502, 1
          %v2504 = vadd.f32 %v2502, %v2503
          %v2505 = vmul.f32 %v2244, %v2244
          %v2506 = vmul.f32 %v2245, %v2245
          %v2507 = vmul.f32 %v2246, %v2246
          %v2508 = vmul.f32 %v2247, %v2247
          %v2509 = vmul.f32 %v2248, %v2248
          %v2510 = vmul.f32 %v2249, %v2249
          %v2511 = vmul.f32 %v2250, %v2250
          %v2512 = vmul.f32 %v2251, %v2251
          %v2513 = vmul.f32 %v2252, %v2252
          %v2514 = vmul.f32 %v2253, %v2253
          %v2515 = vmul.f32 %v2254, %v2254
          %v2516 = vmul.f32 %v2255, %v2255
          %v2517 = vmul.f32 %v2256, %v2256
          %v2518 = vmul.f32 %v2257, %v2257
          %v2519 = vmul.f32 %v2258, %v2258
          %v2520 = vmul.f32 %v2259, %v2259
          %v2521 = vmul.f32 %v2260, %v2260
          %v2522 = vmul.f32 %v2261, %v2261
          %v2523 = vmul.f32 %v2262, %v2262
          %v2524 = vmul.f32 %v2263, %v2263
          %v2525 = vmul.f32 %v2264, %v2264
          %v2526 = vmul.f32 %v2265, %v2265
          %v2527 = vmul.f32 %v2266, %v2266
          %v2528 = vmul.f32 %v2267, %v2267
          %v2529 = vmul.f32 %v2268, %v2268
          %v2530 = vmul.f32 %v2269, %v2269
          %v2531 = vmul.f32 %v2270, %v2270
          %v2532 = vmul.f32 %v2271, %v2271
          %v2533 = vmul.f32 %v2272, %v2272
          %v2534 = vmul.f32 %v2273, %v2273
          %v2535 = vmul.f32 %v2274, %v2274
          %v2536 = vmul.f32 %v2275, %v2275
          %v2537 = vmul.f32 %v2276, %v2276
          %v2538 = vmul.f32 %v2277, %v2277
          %v2539 = vmul.f32 %v2278, %v2278
          %v2540 = vmul.f32 %v2279, %v2279
          %v2541 = vmul.f32 %v2280, %v2280
          %v2542 = vmul.f32 %v2281, %v2281
          %v2543 = vmul.f32 %v2282, %v2282
          %v2544 = vmul.f32 %v2283, %v2283
          %v2545 = vmul.f32 %v2284, %v2284
          %v2546 = vmul.f32 %v2285, %v2285
          %v2547 = vmul.f32 %v2286, %v2286
          %v2548 = vmul.f32 %v2287, %v2287
          %v2549 = vmul.f32 %v2288, %v2288
          %v2550 = vmul.f32 %v2289, %v2289
          %v2551 = vmul.f32 %v2290, %v2290
          %v2552 = vmul.f32 %v2291, %v2291
          %v2553 = vmul.f32 %v2292, %v2292
          %v2554 = vmul.f32 %v2293, %v2293
          %v2555 = vmul.f32 %v2294, %v2294
          %v2556 = vmul.f32 %v2295, %v2295
          %v2557 = vmul.f32 %v2296, %v2296
          %v2558 = vmul.f32 %v2297, %v2297
          %v2559 = vmul.f32 %v2298, %v2298
          %v2560 = vmul.f32 %v2299, %v2299
          %v2561 = vmul.f32 %v2300, %v2300
          %v2562 = vmul.f32 %v2301, %v2301
          %v2563 = vmul.f32 %v2302, %v2302
          %v2564 = vmul.f32 %v2303, %v2303
          %v2565 = vmul.f32 %v2304, %v2304
          %v2566 = vmul.f32 %v2305, %v2305
          %v2567 = vmul.f32 %v2306, %v2306
          %v2568 = vmul.f32 %v2307, %v2307
          %v2569 = vadd.f32 %v2505, %v2506
          %v2570 = vadd.f32 %v2569, %v2507
          %v2571 = vadd.f32 %v2570, %v2508
          %v2572 = vadd.f32 %v2571, %v2509
          %v2573 = vadd.f32 %v2572, %v2510
          %v2574 = vadd.f32 %v2573, %v2511
          %v2575 = vadd.f32 %v2574, %v2512
          %v2576 = vadd.f32 %v2575, %v2513
          %v2577 = vadd.f32 %v2576, %v2514
          %v2578 = vadd.f32 %v2577, %v2515
          %v2579 = vadd.f32 %v2578, %v2516
          %v2580 = vadd.f32 %v2579, %v2517
          %v2581 = vadd.f32 %v2580, %v2518
          %v2582 = vadd.f32 %v2581, %v2519
          %v2583 = vadd.f32 %v2582, %v2520
          %v2584 = vadd.f32 %v2583, %v2521
          %v2585 = vadd.f32 %v2584, %v2522
          %v2586 = vadd.f32 %v2585, %v2523
          %v2587 = vadd.f32 %v2586, %v2524
          %v2588 = vadd.f32 %v2587, %v2525
          %v2589 = vadd.f32 %v2588, %v2526
          %v2590 = vadd.f32 %v2589, %v2527
          %v2591 = vadd.f32 %v2590, %v2528
          %v2592 = vadd.f32 %v2591, %v2529
          %v2593 = vadd.f32 %v2592, %v2530
          %v2594 = vadd.f32 %v2593, %v2531
          %v2595 = vadd.f32 %v2594, %v2532
          %v2596 = vadd.f32 %v2595, %v2533
          %v2597 = vadd.f32 %v2596, %v2534
          %v2598 = vadd.f32 %v2597, %v2535
          %v2599 = vadd.f32 %v2598, %v2536
          %v2600 = vadd.f32 %v2599, %v2537
          %v2601 = vadd.f32 %v2600, %v2538
          %v2602 = vadd.f32 %v2601, %v2539
          %v2603 = vadd.f32 %v2602, %v2540
          %v2604 = vadd.f32 %v2603, %v2541
          %v2605 = vadd.f32 %v2604, %v2542
          %v2606 = vadd.f32 %v2605, %v2543
          %v2607 = vadd.f32 %v2606, %v2544
          %v2608 = vadd.f32 %v2607, %v2545
          %v2609 = vadd.f32 %v2608, %v2546
          %v2610 = vadd.f32 %v2609, %v2547
          %v2611 = vadd.f32 %v2610, %v2548
          %v2612 = vadd.f32 %v2611, %v2549
          %v2613 = vadd.f32 %v2612, %v2550
          %v2614 = vadd.f32 %v2613, %v2551
          %v2615 = vadd.f32 %v2614, %v2552
          %v2616 = vadd.f32 %v2615, %v2553
          %v2617 = vadd.f32 %v2616, %v2554
          %v2618 = vadd.f32 %v2617, %v2555
          %v2619 = vadd.f32 %v2618, %v2556
          %v2620 = vadd.f32 %v2619, %v2557
          %v2621 = vadd.f32 %v2620, %v2558
          %v2622 = vadd.f32 %v2621, %v2559
          %v2623 = vadd.f32 %v2622, %v2560
          %v2624 = vadd.f32 %v2623, %v2561
          %v2625 = vadd.f32 %v2624, %v2562
          %v2626 = vadd.f32 %v2625, %v2563
          %v2627 = vadd.f32 %v2626, %v2564
          %v2628 = vadd.f32 %v2627, %v2565
          %v2629 = vadd.f32 %v2628, %v2566
          %v2630 = vadd.f32 %v2629, %v2567
          %v2631 = vadd.f32 %v2630, %v2568
          %v2632 = vrot.slane %v2631, 4
          %v2633 = vadd.f32 %v2631, %v2632
          %v2634 = vrot.slane %v2633, 2
          %v2635 = vadd.f32 %v2633, %v2634
          %v2636 = vrot.slane %v2635, 1
          %v2637 = vadd.f32 %v2635, %v2636
          %vm2638 = vcmask 1040384
          %v2639 = vsel %vm2638, %v2504, %v2637
          %2640 = vst [vmem:[%s275] sm:$0x3] %v2639
        $region44: #{matmul_bn_stats.1} parent=27 // pred_fallthru
          _
        %s2641 = sand.u32 %s112, 1
        %s2642 = scalar_lea.sflag [#allocation5], %s2641
        %s2643 = sand.u32 %s112, 1
        %s2644 = smul.addr %s2643, 256
        %s2645 = scalar_lea.vmem [#allocation8], %s2644
        %s2646 = sand.u32 %s140, 1
        %s2647 = scalar_lea.sflag [#allocation10], %s2646
        %s2648 = sand.u32 %s140, 1
        %s2649 = smul.addr %s2648, 2
        %s2650 = scalar_lea.vmem [#allocation9], %s2649
        // Predicated region
        $region45: #{matmul_bn_stats.1} parent=27 // pred_check
          %p2651 = pneg %p122
        $region46: #{matmul_bn_stats.1} parent=27 // pred_check_branch
          %2653 = sbr.rel (%p2651) target = $region48
        $region47: #{matmul_bn_stats.1} parent=27 // pred_region
          %s2654 = smul.u32 64, %s32
          %2656 = vsyncadd %s2642, 0
          %s2657 = smul.addr %s2654, 3
          %s2658 = sadd.s32 %s33, %s2657
          %s2659 = smul.addr %s2658, 4
          %s2660 = scalar_lea.hbm %s2, %s2659
          %s2661 = sshll.u32 %s2645, 4
          %s2662 = int_to_ptr.vmem [resolvable:$true] %s2661
          %s2663 = sshll.u32 %s2660, 4
          %s2664 = int_to_ptr.hbm [resolvable:$true] %s2663
          %2669 = dma.vmem_to_hbm [thread:$0]  %s2662, 4096, %s2664, %s2642, 64, 192, 4
        $region48: #{matmul_bn_stats.1} parent=27 // pred_fallthru
          _
        // Predicated region
        $region49: #{matmul_bn_stats.1} parent=27 // pred_check
          %p2670 = pneg %p150
        $region50: #{matmul_bn_stats.1} parent=27 // pred_check_branch
          %2672 = sbr.rel (%p2670) target = $region52
        $region51: #{matmul_bn_stats.1} parent=27 // pred_region
          %2674 = vsyncadd %s2647, 0
          %s2675 = smul.addr %s32, 3
          %s2676 = sadd.s32 %s33, %s2675
          %s2677 = smul.addr %s2676, 2
          %s2678 = scalar_lea.hbm %s3, %s2677
          %s2680 = sshll.u32 %s2650, 4
          %s2681 = int_to_ptr.vmem [resolvable:$true] %s2680
          %s2682 = sshll.u32 %s2678, 4
          %s2683 = int_to_ptr.hbm [resolvable:$true] %s2682
          %2685 = dma.vmem_to_hbm [thread:$0]  %s2681, 32, %s2683, %s2647
        $region52: #{matmul_bn_stats.1} parent=27 // pred_fallthru
          _
      $region28: #{matmul_bn_stats.1} parent=5 // pred_fallthru
        _
      %p2686 = scmp.le.s32.totalorder 2, %s22
      // Predicated region
      $region53: #{matmul_bn_stats.1} parent=5 // pred_check
        %p2687 = pneg %p2686
      $region54: #{matmul_bn_stats.1} parent=5 // pred_check_branch
        %2689 = sbr.rel (%p2687) target = $region56
      $region55: #{matmul_bn_stats.1} parent=5 // pred_region
        %s2690 = ssub.s32 %s22, 2
        // Predicated region
        $region57: #{matmul_bn_stats.1} parent=55 // pred_check
          %p2691 = pneg %p128
        $region58: #{matmul_bn_stats.1} parent=55 // pred_check_branch
          %2693 = sbr.rel (%p2691) target = $region60
        $region59: #{matmul_bn_stats.1} parent=55 // pred_region
          %s2694 = sand.u32 %s113, 1
          %s2695 = scalar_lea.sflag [#allocation5], %s2694
          %s2696 = sand.u32 %s113, 1
          %s2697 = smul.addr %s2696, 256
          %s2698 = scalar_lea.vmem [#allocation8], %s2697
          %2700 = dma.done %s2695, 4096
        $region60: #{matmul_bn_stats.1} parent=55 // pred_fallthru
          _
        // Predicated region
        $region61: #{matmul_bn_stats.1} parent=55 // pred_check
          %p2701 = pneg %p156
        $region62: #{matmul_bn_stats.1} parent=55 // pred_check_branch
          %2703 = sbr.rel (%p2701) target = $region64
        $region63: #{matmul_bn_stats.1} parent=55 // pred_region
          %s2704 = sand.u32 %s141, 1
          %s2705 = scalar_lea.sflag [#allocation10], %s2704
          %s2706 = sand.u32 %s141, 1
          %s2707 = smul.addr %s2706, 2
          %s2708 = scalar_lea.vmem [#allocation9], %s2707
          %2710 = dma.done %s2705, 32
        $region64: #{matmul_bn_stats.1} parent=55 // pred_fallthru
          _
      $region56: #{matmul_bn_stats.1} parent=5 // pred_fallthru
        _
    $region6: #{matmul_bn_stats.1} parent=1 // loop_footer
      %s26 = sadd.s32 1, %s22
    $region7: #{matmul_bn_stats.1} parent=1 // loop_footer_branch
      %21 = sbr.rel target = $region3
    $region8: #{matmul_bn_stats.1} parent=1 // loop_exit
      _
    %2711 = vsyncpa [#allocation4], 1
    %s2712 = scalar_lea.sflag [#allocation4], 1
    %2713 = vsyncpa %s2712, 1
    %2714 = vsyncpa [#allocation7], 1
    %s2715 = scalar_lea.sflag [#allocation7], 1
    %2716 = vsyncpa %s2715, 1
    %2717 = vsyncpa [#allocation5], 1
    %s2718 = scalar_lea.sflag [#allocation5], 1
    %2719 = vsyncpa %s2718, 1
    %2720 = vsyncpa [#allocation10], 1
    %s2721 = scalar_lea.sflag [#allocation10], 1
    %2722 = vsyncpa %s2721, 1

</llo_original>
